<compile_context>
chip_gen: v7x
topology: tpu7x:2x2x1
jax: 0.10.0
libtpu: 0.0.40
codegen_flags: <defaults>
</compile_context>

<pallas_src>
import math

import jax
import jax.numpy as jnp
from jax.experimental import pallas as pl
from jax.experimental.pallas import tpu as pltpu

KPAD = 24        # padded feature/hidden width (real widths are 2, 20, 1)
EPS = 1e-6


# ---------------------------------------------------------------------------
# Kernel
# ---------------------------------------------------------------------------
def pinn_kernel(x_ref, wr_ref, br_ref, wq_ref, bq_ref, out_ref):
    """One batch tile, feature-major (features on sublanes, batch on lanes).

    x_ref  : (2, T)            rows 0/1 = (x, t)
    wr_ref : (Lr, KPAD, KPAD)  rho-net weights, PyTorch (out, in) layout, 0-padded
    br_ref : (Lr, KPAD, 1)     rho-net biases
    wq_ref : (Lq, KPAD, KPAD)  q-net weights
    bq_ref : (Lq, KPAD, 1)     q-net biases
    out_ref: (3, T)            rows: rho_hat, Q_hat, u_hat (lane-dense)
    """
    x0 = x_ref[0:1, :]                      # (1, T)
    x1 = x_ref[1:2, :]                      # (1, T)

    # ---- rho net: layer 0 on the VPU (fan-in 2 -> two broadcast FMAs) ----
    w0 = wr_ref[0]                          # (KPAD, KPAD), only cols 0..1 used
    h = jnp.tanh(w0[:, 0:1] * x0 + w0[:, 1:2] * x1 + br_ref[0])   # (KPAD, T)

    # ---- remaining rho layers on the MXU (24-wide contraction) ----
    n_rho = wr_ref.shape[0]
    for l in range(1, n_rho):               # static python loop -> unrolled
        z = jnp.dot(wr_ref[l], h, preferred_element_type=jnp.float32) + br_ref[l]
        h = jnp.tanh(z) if l < n_rho - 1 else z
    rho = h[0:1, :]                         # (1, T): row 0 is rho_hat

    # ---- q net: layer 0 on the VPU (fan-in 1 -> one broadcast FMA) ----
    wq0 = wq_ref[0]
    g = jnp.tanh(wq0[:, 0:1] * rho + bq_ref[0])
    n_q = wq_ref.shape[0]
    for l in range(1, n_q):
        z = jnp.dot(wq_ref[l], g, preferred_element_type=jnp.float32) + bq_ref[l]
        g = jnp.tanh(z) if l < n_q - 1 else z
    q = g[0:1, :]                           # (1, T): row 0 is Q_hat

    # Exact divide to match PyTorch's Q_hat / (rho_hat + eps).
    u = q / (rho + EPS)

    # One lane-dense (3, T) store (single vector-store slot on v5e).
    out_ref[...] = jnp.concatenate([rho, q, u], axis=0)


# ---------------------------------------------------------------------------
# Wrapper
# ---------------------------------------------------------------------------
@jax.jit
def pinn_forward(X, wr, br, wq, bq):
    """X: (N, 2) float32.  Returns a (3, N) slab: rows = rho_hat, Q_hat, u_hat."""
    N = X.shape[0]
    assert N % 128 == 0, "N must be a multiple of 128 (lane width)"

    # Generation-aware tiling: one grid step for small N (no per-step overhead),
    # cap the tile at 512 lanes for large N (keeps the unrolled 12-layer body
    # within the vreg file; extra batch goes into more grid steps).
    if N <= 512:
        tile = N
    else:
        tile = 512
        while N % tile:
            tile -= 128
    assert tile >= 128 and N % tile == 0

    x_t = X.T                               # (2, N): tiny, no (N,128) padding
    Lr, Lq = wr.shape[0], wq.shape[0]
    KP = wr.shape[1]

    out = pl.pallas_call(
        pinn_kernel,
        out_shape=jax.ShapeDtypeStruct((3, N), jnp.float32),
        grid=(N // tile,),
        in_specs=[
            pl.BlockSpec((2, tile), lambda i: (0, i)),
            # Constant index_map -> weights/biases are DMA'd into VMEM once.
            pl.BlockSpec((Lr, KP, KP), lambda i: (0, 0, 0)),
            pl.BlockSpec((Lr, KP, 1), lambda i: (0, 0, 0)),
            pl.BlockSpec((Lq, KP, KP), lambda i: (0, 0, 0)),
            pl.BlockSpec((Lq, KP, 1), lambda i: (0, 0, 0)),
        ],
        out_specs=pl.BlockSpec((3, tile), lambda i: (0, i)),
        compiler_params=pltpu.CompilerParams(
            dimension_semantics=("parallel",)),
    )(x_t, wr, br, wq, bq)

    return out


# ---------------------------------------------------------------------------
# Deterministic parameter construction (PyTorch Linear-style uniform init)
# ---------------------------------------------------------------------------
def _make_mlp_params(key, input_dim, hidden_dim, num_hidden, output_dim):
    """Padded (L, KPAD, KPAD) weights in PyTorch (out, in) layout, (L, KPAD, 1) biases."""
    dims = [input_dim] + [hidden_dim] * num_hidden + [output_dim]
    L = len(dims) - 1
    W = jnp.zeros((L, KPAD, KPAD), jnp.float32)
    B = jnp.zeros((L, KPAD, 1), jnp.float32)
    for i in range(L):
        fan_in, fan_out = dims[i], dims[i + 1]
        key, kw, kb = jax.random.split(key, 3)
        bound = 1.0 / math.sqrt(fan_in)
        w = jax.random.uniform(kw, (fan_out, fan_in), jnp.float32, -bound, bound)
        b = jax.random.uniform(kb, (fan_out,), jnp.float32, -bound, bound)
        W = W.at[i, :fan_out, :fan_in].set(w)
        B = B.at[i, :fan_out, 0].set(b)
    return W, B, dims


def _mlp_ref(x, W, B, dims):
    """Plain-JAX reference using only the unpadded slices (PyTorch semantics)."""
    h = x
    L = len(dims) - 1
    for i in range(L):
        fi, fo = dims[i], dims[i + 1]
        z = h @ W[i, :fo, :fi].T + B[i, :fo, 0]
        h = jnp.tanh(z) if i < L - 1 else z
    return h


# ---------------------------------------------------------------------------
if __name__ == "__main__":
    # PINN(rho_hidden_dim=20, rho_num_hidden=8, q_hidden_dim=20, q_num_hidden=2)
    rho_hidden, rho_num = 20, 8
    q_hidden, q_num = 20, 2

    key = jax.random.PRNGKey(0)
    k_x, k_rho, k_q = jax.random.split(key, 3)

    wr, br, rho_dims = _make_mlp_params(k_rho, 2, rho_hidden, rho_num, 1)
    wq, bq, q_dims = _make_mlp_params(k_q, 1, q_hidden, q_num, 1)

    N = 256                     # small batch of (x, t) collocation points
    X = jax.random.normal(k_x, (N, 2), jnp.float32)

    out = pinn_forward(X, wr, br, wq, bq)
    jax.block_until_ready(out)
    assert out.shape == (3, N)

    # Framework-boundary split (outside the jit / kernel): (N,) rows.
    rho_hat, Q_hat, u_hat = out[0], out[1], out[2]

    # ---- correctness vs a plain-JAX reference of the same math ----
    rho_ref = _mlp_ref(X, wr, br, rho_dims)[:, 0]                 # (N,)
    Q_ref = _mlp_ref(rho_ref[:, None], wq, bq, q_dims)[:, 0]      # (N,)

    assert jnp.allclose(rho_hat, rho_ref, atol=1e-5, rtol=1e-5)
    assert jnp.allclose(Q_hat, Q_ref, atol=1e-5, rtol=1e-5)
    # u_hat = Q/(rho+eps) is now an exact divide inside the kernel; check
    # consistency against the kernel's own rho/Q (an end-to-end u comparison is
    # ill-conditioned wherever rho happens to land near -eps).
    assert jnp.allclose(u_hat, Q_hat / (rho_hat + EPS), rtol=1e-4, atol=1e-5)

    print("KERNEL_OK")
</pallas_src>

<mosaic_0001>
module attributes {stable_mosaic.version = 11 : i64} {
  func.func @pinn_kernel(%arg0: i32, %arg1: memref<2x256xf32, #tpu.memory_space<vmem>>, %arg2: memref<9x24x24xf32, #tpu.memory_space<vmem>>, %arg3: memref<9x24x1xf32, #tpu.memory_space<vmem>>, %arg4: memref<3x24x24xf32, #tpu.memory_space<vmem>>, %arg5: memref<3x24x1xf32, #tpu.memory_space<vmem>>, %arg6: memref<3x256xf32, #tpu.memory_space<vmem>>) attributes {dimension_semantics = [#tpu.dimension_semantics<parallel>], iteration_bounds = array<i64: 1>, scalar_prefetch = 0 : i64, scratch_operands = 0 : i64, tpu.core_type = #tpu.core_type<tc>, window_params = [{transform_indices = @transform_0, window_bounds = array<i64: 2, 256>}, {pipeline_mode = #tpu.pipeline_mode<synchronous>, transform_indices = @transform_1, window_bounds = array<i64: 9, 24, 24>}, {pipeline_mode = #tpu.pipeline_mode<synchronous>, transform_indices = @transform_2, window_bounds = array<i64: 9, 24, 1>}, {pipeline_mode = #tpu.pipeline_mode<synchronous>, transform_indices = @transform_3, window_bounds = array<i64: 3, 24, 24>}, {pipeline_mode = #tpu.pipeline_mode<synchronous>, transform_indices = @transform_4, window_bounds = array<i64: 3, 24, 1>}, {transform_indices = @transform_5, window_bounds = array<i64: 3, 256>}]} {
    %c0 = arith.constant 0 : index
    %c0_0 = arith.constant 0 : index
    %0 = vector.load %arg1[%c0, %c0_0] : memref<2x256xf32, #tpu.memory_space<vmem>>, vector<1x256xf32>
    %c1 = arith.constant 1 : index
    %c0_1 = arith.constant 0 : index
    %1 = vector.load %arg1[%c1, %c0_1] : memref<2x256xf32, #tpu.memory_space<vmem>>, vector<1x256xf32>
    %c0_2 = arith.constant 0 : index
    %c0_3 = arith.constant 0 : index
    %c0_4 = arith.constant 0 : index
    %2 = vector.load %arg2[%c0_2, %c0_3, %c0_4] : memref<9x24x24xf32, #tpu.memory_space<vmem>>, vector<1x24x24xf32>
    %3 = vector.shape_cast %2 : vector<1x24x24xf32> to vector<24x24xf32>
    %4 = vector.extract_strided_slice %3 {offsets = [0, 0], sizes = [24, 1], strides = [1, 1]} : vector<24x24xf32> to vector<24x1xf32>
    %5 = vector.broadcast %4 : vector<24x1xf32> to vector<24x256xf32>
    %6 = vector.broadcast %0 : vector<1x256xf32> to vector<24x256xf32>
    %7 = arith.mulf %5, %6 : vector<24x256xf32>
    %8 = vector.extract_strided_slice %3 {offsets = [0, 1], sizes = [24, 1], strides = [1, 1]} : vector<24x24xf32> to vector<24x1xf32>
    %9 = vector.broadcast %8 : vector<24x1xf32> to vector<24x256xf32>
    %10 = vector.broadcast %1 : vector<1x256xf32> to vector<24x256xf32>
    %11 = arith.mulf %9, %10 : vector<24x256xf32>
    %12 = arith.addf %7, %11 : vector<24x256xf32>
    %c0_5 = arith.constant 0 : index
    %c0_6 = arith.constant 0 : index
    %c0_7 = arith.constant 0 : index
    %13 = vector.load %arg3[%c0_5, %c0_6, %c0_7] : memref<9x24x1xf32, #tpu.memory_space<vmem>>, vector<1x24x1xf32>
    %14 = vector.shape_cast %13 : vector<1x24x1xf32> to vector<24x1xf32>
    %15 = vector.broadcast %14 : vector<24x1xf32> to vector<24x256xf32>
    %16 = arith.addf %12, %15 : vector<24x256xf32>
    %17 = math.tanh %16 : vector<24x256xf32>
    %c1_8 = arith.constant 1 : index
    %c0_9 = arith.constant 0 : index
    %c0_10 = arith.constant 0 : index
    %18 = vector.load %arg2[%c1_8, %c0_9, %c0_10] : memref<9x24x24xf32, #tpu.memory_space<vmem>>, vector<1x24x24xf32>
    %19 = vector.shape_cast %18 : vector<1x24x24xf32> to vector<24x24xf32>
    %cst = arith.constant dense<0.000000e+00> : vector<24x256xf32>
    %20 = tpu.matmul %19, %17, %cst {dimension_numbers = #tpu.dot_dimension_numbers<[1], [0], [0], [1], [0, 0, 1, 1], [], []>} : vector<24x24xf32>, vector<24x256xf32>, vector<24x256xf32> -> vector<24x256xf32>
    %c1_11 = arith.constant 1 : index
    %c0_12 = arith.constant 0 : index
    %c0_13 = arith.constant 0 : index
    %21 = vector.load %arg3[%c1_11, %c0_12, %c0_13] : memref<9x24x1xf32, #tpu.memory_space<vmem>>, vector<1x24x1xf32>
    %22 = vector.shape_cast %21 : vector<1x24x1xf32> to vector<24x1xf32>
    %23 = vector.broadcast %22 : vector<24x1xf32> to vector<24x256xf32>
    %24 = arith.addf %20, %23 : vector<24x256xf32>
    %25 = math.tanh %24 : vector<24x256xf32>
    %c2 = arith.constant 2 : index
    %c0_14 = arith.constant 0 : index
    %c0_15 = arith.constant 0 : index
    %26 = vector.load %arg2[%c2, %c0_14, %c0_15] : memref<9x24x24xf32, #tpu.memory_space<vmem>>, vector<1x24x24xf32>
    %27 = vector.shape_cast %26 : vector<1x24x24xf32> to vector<24x24xf32>
    %cst_16 = arith.constant dense<0.000000e+00> : vector<24x256xf32>
    %28 = tpu.matmul %27, %25, %cst_16 {dimension_numbers = #tpu.dot_dimension_numbers<[1], [0], [0], [1], [0, 0, 1, 1], [], []>} : vector<24x24xf32>, vector<24x256xf32>, vector<24x256xf32> -> vector<24x256xf32>
    %c2_17 = arith.constant 2 : index
    %c0_18 = arith.constant 0 : index
    %c0_19 = arith.constant 0 : index
    %29 = vector.load %arg3[%c2_17, %c0_18, %c0_19] : memref<9x24x1xf32, #tpu.memory_space<vmem>>, vector<1x24x1xf32>
    %30 = vector.shape_cast %29 : vector<1x24x1xf32> to vector<24x1xf32>
    %31 = vector.broadcast %30 : vector<24x1xf32> to vector<24x256xf32>
    %32 = arith.addf %28, %31 : vector<24x256xf32>
    %33 = math.tanh %32 : vector<24x256xf32>
    %c3 = arith.constant 3 : index
    %c0_20 = arith.constant 0 : index
    %c0_21 = arith.constant 0 : index
    %34 = vector.load %arg2[%c3, %c0_20, %c0_21] : memref<9x24x24xf32, #tpu.memory_space<vmem>>, vector<1x24x24xf32>
    %35 = vector.shape_cast %34 : vector<1x24x24xf32> to vector<24x24xf32>
    %cst_22 = arith.constant dense<0.000000e+00> : vector<24x256xf32>
    %36 = tpu.matmul %35, %33, %cst_22 {dimension_numbers = #tpu.dot_dimension_numbers<[1], [0], [0], [1], [0, 0, 1, 1], [], []>} : vector<24x24xf32>, vector<24x256xf32>, vector<24x256xf32> -> vector<24x256xf32>
    %c3_23 = arith.constant 3 : index
    %c0_24 = arith.constant 0 : index
    %c0_25 = arith.constant 0 : index
    %37 = vector.load %arg3[%c3_23, %c0_24, %c0_25] : memref<9x24x1xf32, #tpu.memory_space<vmem>>, vector<1x24x1xf32>
    %38 = vector.shape_cast %37 : vector<1x24x1xf32> to vector<24x1xf32>
    %39 = vector.broadcast %38 : vector<24x1xf32> to vector<24x256xf32>
    %40 = arith.addf %36, %39 : vector<24x256xf32>
    %41 = math.tanh %40 : vector<24x256xf32>
    %c4 = arith.constant 4 : index
    %c0_26 = arith.constant 0 : index
    %c0_27 = arith.constant 0 : index
    %42 = vector.load %arg2[%c4, %c0_26, %c0_27] : memref<9x24x24xf32, #tpu.memory_space<vmem>>, vector<1x24x24xf32>
    %43 = vector.shape_cast %42 : vector<1x24x24xf32> to vector<24x24xf32>
    %cst_28 = arith.constant dense<0.000000e+00> : vector<24x256xf32>
    %44 = tpu.matmul %43, %41, %cst_28 {dimension_numbers = #tpu.dot_dimension_numbers<[1], [0], [0], [1], [0, 0, 1, 1], [], []>} : vector<24x24xf32>, vector<24x256xf32>, vector<24x256xf32> -> vector<24x256xf32>
    %c4_29 = arith.constant 4 : index
    %c0_30 = arith.constant 0 : index
    %c0_31 = arith.constant 0 : index
    %45 = vector.load %arg3[%c4_29, %c0_30, %c0_31] : memref<9x24x1xf32, #tpu.memory_space<vmem>>, vector<1x24x1xf32>
    %46 = vector.shape_cast %45 : vector<1x24x1xf32> to vector<24x1xf32>
    %47 = vector.broadcast %46 : vector<24x1xf32> to vector<24x256xf32>
    %48 = arith.addf %44, %47 : vector<24x256xf32>
    %49 = math.tanh %48 : vector<24x256xf32>
    %c5 = arith.constant 5 : index
    %c0_32 = arith.constant 0 : index
    %c0_33 = arith.constant 0 : index
    %50 = vector.load %arg2[%c5, %c0_32, %c0_33] : memref<9x24x24xf32, #tpu.memory_space<vmem>>, vector<1x24x24xf32>
    %51 = vector.shape_cast %50 : vector<1x24x24xf32> to vector<24x24xf32>
    %cst_34 = arith.constant dense<0.000000e+00> : vector<24x256xf32>
    %52 = tpu.matmul %51, %49, %cst_34 {dimension_numbers = #tpu.dot_dimension_numbers<[1], [0], [0], [1], [0, 0, 1, 1], [], []>} : vector<24x24xf32>, vector<24x256xf32>, vector<24x256xf32> -> vector<24x256xf32>
    %c5_35 = arith.constant 5 : index
    %c0_36 = arith.constant 0 : index
    %c0_37 = arith.constant 0 : index
    %53 = vector.load %arg3[%c5_35, %c0_36, %c0_37] : memref<9x24x1xf32, #tpu.memory_space<vmem>>, vector<1x24x1xf32>
    %54 = vector.shape_cast %53 : vector<1x24x1xf32> to vector<24x1xf32>
    %55 = vector.broadcast %54 : vector<24x1xf32> to vector<24x256xf32>
    %56 = arith.addf %52, %55 : vector<24x256xf32>
    %57 = math.tanh %56 : vector<24x256xf32>
    %c6 = arith.constant 6 : index
    %c0_38 = arith.constant 0 : index
    %c0_39 = arith.constant 0 : index
    %58 = vector.load %arg2[%c6, %c0_38, %c0_39] : memref<9x24x24xf32, #tpu.memory_space<vmem>>, vector<1x24x24xf32>
    %59 = vector.shape_cast %58 : vector<1x24x24xf32> to vector<24x24xf32>
    %cst_40 = arith.constant dense<0.000000e+00> : vector<24x256xf32>
    %60 = tpu.matmul %59, %57, %cst_40 {dimension_numbers = #tpu.dot_dimension_numbers<[1], [0], [0], [1], [0, 0, 1, 1], [], []>} : vector<24x24xf32>, vector<24x256xf32>, vector<24x256xf32> -> vector<24x256xf32>
    %c6_41 = arith.constant 6 : index
    %c0_42 = arith.constant 0 : index
    %c0_43 = arith.constant 0 : index
    %61 = vector.load %arg3[%c6_41, %c0_42, %c0_43] : memref<9x24x1xf32, #tpu.memory_space<vmem>>, vector<1x24x1xf32>
    %62 = vector.shape_cast %61 : vector<1x24x1xf32> to vector<24x1xf32>
    %63 = vector.broadcast %62 : vector<24x1xf32> to vector<24x256xf32>
    %64 = arith.addf %60, %63 : vector<24x256xf32>
    %65 = math.tanh %64 : vector<24x256xf32>
    %c7 = arith.constant 7 : index
    %c0_44 = arith.constant 0 : index
    %c0_45 = arith.constant 0 : index
    %66 = vector.load %arg2[%c7, %c0_44, %c0_45] : memref<9x24x24xf32, #tpu.memory_space<vmem>>, vector<1x24x24xf32>
    %67 = vector.shape_cast %66 : vector<1x24x24xf32> to vector<24x24xf32>
    %cst_46 = arith.constant dense<0.000000e+00> : vector<24x256xf32>
    %68 = tpu.matmul %67, %65, %cst_46 {dimension_numbers = #tpu.dot_dimension_numbers<[1], [0], [0], [1], [0, 0, 1, 1], [], []>} : vector<24x24xf32>, vector<24x256xf32>, vector<24x256xf32> -> vector<24x256xf32>
    %c7_47 = arith.constant 7 : index
    %c0_48 = arith.constant 0 : index
    %c0_49 = arith.constant 0 : index
    %69 = vector.load %arg3[%c7_47, %c0_48, %c0_49] : memref<9x24x1xf32, #tpu.memory_space<vmem>>, vector<1x24x1xf32>
    %70 = vector.shape_cast %69 : vector<1x24x1xf32> to vector<24x1xf32>
    %71 = vector.broadcast %70 : vector<24x1xf32> to vector<24x256xf32>
    %72 = arith.addf %68, %71 : vector<24x256xf32>
    %73 = math.tanh %72 : vector<24x256xf32>
    %c8 = arith.constant 8 : index
    %c0_50 = arith.constant 0 : index
    %c0_51 = arith.constant 0 : index
    %74 = vector.load %arg2[%c8, %c0_50, %c0_51] : memref<9x24x24xf32, #tpu.memory_space<vmem>>, vector<1x24x24xf32>
    %75 = vector.shape_cast %74 : vector<1x24x24xf32> to vector<24x24xf32>
    %cst_52 = arith.constant dense<0.000000e+00> : vector<24x256xf32>
    %76 = tpu.matmul %75, %73, %cst_52 {dimension_numbers = #tpu.dot_dimension_numbers<[1], [0], [0], [1], [0, 0, 1, 1], [], []>} : vector<24x24xf32>, vector<24x256xf32>, vector<24x256xf32> -> vector<24x256xf32>
    %c8_53 = arith.constant 8 : index
    %c0_54 = arith.constant 0 : index
    %c0_55 = arith.constant 0 : index
    %77 = vector.load %arg3[%c8_53, %c0_54, %c0_55] : memref<9x24x1xf32, #tpu.memory_space<vmem>>, vector<1x24x1xf32>
    %78 = vector.shape_cast %77 : vector<1x24x1xf32> to vector<24x1xf32>
    %79 = vector.broadcast %78 : vector<24x1xf32> to vector<24x256xf32>
    %80 = arith.addf %76, %79 : vector<24x256xf32>
    %81 = vector.extract_strided_slice %80 {offsets = [0, 0], sizes = [1, 256], strides = [1, 1]} : vector<24x256xf32> to vector<1x256xf32>
    %c0_56 = arith.constant 0 : index
    %c0_57 = arith.constant 0 : index
    %c0_58 = arith.constant 0 : index
    %82 = vector.load %arg4[%c0_56, %c0_57, %c0_58] : memref<3x24x24xf32, #tpu.memory_space<vmem>>, vector<1x24x24xf32>
    %83 = vector.shape_cast %82 : vector<1x24x24xf32> to vector<24x24xf32>
    %84 = vector.extract_strided_slice %83 {offsets = [0, 0], sizes = [24, 1], strides = [1, 1]} : vector<24x24xf32> to vector<24x1xf32>
    %85 = vector.broadcast %84 : vector<24x1xf32> to vector<24x256xf32>
    %86 = vector.broadcast %81 : vector<1x256xf32> to vector<24x256xf32>
    %87 = arith.mulf %85, %86 : vector<24x256xf32>
    %c0_59 = arith.constant 0 : index
    %c0_60 = arith.constant 0 : index
    %c0_61 = arith.constant 0 : index
    %88 = vector.load %arg5[%c0_59, %c0_60, %c0_61] : memref<3x24x1xf32, #tpu.memory_space<vmem>>, vector<1x24x1xf32>
    %89 = vector.shape_cast %88 : vector<1x24x1xf32> to vector<24x1xf32>
    %90 = vector.broadcast %89 : vector<24x1xf32> to vector<24x256xf32>
    %91 = arith.addf %87, %90 : vector<24x256xf32>
    %92 = math.tanh %91 : vector<24x256xf32>
    %c1_62 = arith.constant 1 : index
    %c0_63 = arith.constant 0 : index
    %c0_64 = arith.constant 0 : index
    %93 = vector.load %arg4[%c1_62, %c0_63, %c0_64] : memref<3x24x24xf32, #tpu.memory_space<vmem>>, vector<1x24x24xf32>
    %94 = vector.shape_cast %93 : vector<1x24x24xf32> to vector<24x24xf32>
    %cst_65 = arith.constant dense<0.000000e+00> : vector<24x256xf32>
    %95 = tpu.matmul %94, %92, %cst_65 {dimension_numbers = #tpu.dot_dimension_numbers<[1], [0], [0], [1], [0, 0, 1, 1], [], []>} : vector<24x24xf32>, vector<24x256xf32>, vector<24x256xf32> -> vector<24x256xf32>
    %c1_66 = arith.constant 1 : index
    %c0_67 = arith.constant 0 : index
    %c0_68 = arith.constant 0 : index
    %96 = vector.load %arg5[%c1_66, %c0_67, %c0_68] : memref<3x24x1xf32, #tpu.memory_space<vmem>>, vector<1x24x1xf32>
    %97 = vector.shape_cast %96 : vector<1x24x1xf32> to vector<24x1xf32>
    %98 = vector.broadcast %97 : vector<24x1xf32> to vector<24x256xf32>
    %99 = arith.addf %95, %98 : vector<24x256xf32>
    %100 = math.tanh %99 : vector<24x256xf32>
    %c2_69 = arith.constant 2 : index
    %c0_70 = arith.constant 0 : index
    %c0_71 = arith.constant 0 : index
    %101 = vector.load %arg4[%c2_69, %c0_70, %c0_71] : memref<3x24x24xf32, #tpu.memory_space<vmem>>, vector<1x24x24xf32>
    %102 = vector.shape_cast %101 : vector<1x24x24xf32> to vector<24x24xf32>
    %cst_72 = arith.constant dense<0.000000e+00> : vector<24x256xf32>
    %103 = tpu.matmul %102, %100, %cst_72 {dimension_numbers = #tpu.dot_dimension_numbers<[1], [0], [0], [1], [0, 0, 1, 1], [], []>} : vector<24x24xf32>, vector<24x256xf32>, vector<24x256xf32> -> vector<24x256xf32>
    %c2_73 = arith.constant 2 : index
    %c0_74 = arith.constant 0 : index
    %c0_75 = arith.constant 0 : index
    %104 = vector.load %arg5[%c2_73, %c0_74, %c0_75] : memref<3x24x1xf32, #tpu.memory_space<vmem>>, vector<1x24x1xf32>
    %105 = vector.shape_cast %104 : vector<1x24x1xf32> to vector<24x1xf32>
    %106 = vector.broadcast %105 : vector<24x1xf32> to vector<24x256xf32>
    %107 = arith.addf %103, %106 : vector<24x256xf32>
    %108 = vector.extract_strided_slice %107 {offsets = [0, 0], sizes = [1, 256], strides = [1, 1]} : vector<24x256xf32> to vector<1x256xf32>
    %cst_76 = arith.constant 9.99999997E-7 : f32
    %109 = vector.broadcast %cst_76 : f32 to vector<1x256xf32>
    %110 = arith.addf %81, %109 : vector<1x256xf32>
    %111 = arith.divf %108, %110 : vector<1x256xf32>
    %112 = tpu.concatenate %81, %108, %111 in 0 : vector<1x256xf32>, vector<1x256xf32>, vector<1x256xf32> -> vector<3x256xf32>
    %c0_77 = arith.constant 0 : index
    %c0_78 = arith.constant 0 : index
    %113 = vector.load %arg6[%c0_77, %c0_78] : memref<3x256xf32, #tpu.memory_space<vmem>>, vector<3x256xf32>
    tpu.vector_store %arg6[%c0_77, %c0_78], %112 {strides = array<i32>} : memref<3x256xf32, #tpu.memory_space<vmem>>, vector<3x256xf32>,
    return
  }
  func.func @transform_0(%arg0: i32) -> (i32, i32) {
    %c0_i32 = arith.constant 0 : i32
    %c0_i32_0 = arith.constant 0 : i32
    return %c0_i32, %arg0 : i32, i32
  }
  func.func @transform_1(%arg0: i32) -> (i32, i32, i32) {
    %c0_i32 = arith.constant 0 : i32
    %c0_i32_0 = arith.constant 0 : i32
    %c0_i32_1 = arith.constant 0 : i32
    %c0_i32_2 = arith.constant 0 : i32
    return %c0_i32, %c0_i32_0, %c0_i32_1 : i32, i32, i32
  }
  func.func @transform_2(%arg0: i32) -> (i32, i32, i32) {
    %c0_i32 = arith.constant 0 : i32
    %c0_i32_0 = arith.constant 0 : i32
    %c0_i32_1 = arith.constant 0 : i32
    %c0_i32_2 = arith.constant 0 : i32
    return %c0_i32, %c0_i32_0, %c0_i32_1 : i32, i32, i32
  }
  func.func @transform_3(%arg0: i32) -> (i32, i32, i32) {
    %c0_i32 = arith.constant 0 : i32
    %c0_i32_0 = arith.constant 0 : i32
    %c0_i32_1 = arith.constant 0 : i32
    %c0_i32_2 = arith.constant 0 : i32
    return %c0_i32, %c0_i32_0, %c0_i32_1 : i32, i32, i32
  }
  func.func @transform_4(%arg0: i32) -> (i32, i32, i32) {
    %c0_i32 = arith.constant 0 : i32
    %c0_i32_0 = arith.constant 0 : i32
    %c0_i32_1 = arith.constant 0 : i32
    %c0_i32_2 = arith.constant 0 : i32
    return %c0_i32, %c0_i32_0, %c0_i32_1 : i32, i32, i32
  }
  func.func @transform_5(%arg0: i32) -> (i32, i32) {
    %c0_i32 = arith.constant 0 : i32
    %c0_i32_0 = arith.constant 0 : i32
    return %c0_i32, %arg0 : i32, i32
  }
}

</mosaic_0001>

<llo_original>
// kernel: pinn_forward.1
$region0: #{pinn_forward.1}
  #allocation0 [shape = 'u32[]', space=smem, size = 0x4, offset = 0x4, fixed_abs, tag = 'smem constant byte address 0x4 - core index']
  #allocation1 [shape = 'u32[144,128]{1,0:T(1,128)}', space=vmem, size = 0x12000, scoped, tag = 'internal scratch']
  %s0 = inlined_call_operand.vmem [shape: f32[2,256], index: 0, kind: input, shape index: {}]
  %s1 = inlined_call_operand.vmem [shape: f32[9,24,24], index: 1, kind: input, shape index: {}]
  %s2 = inlined_call_operand.vmem [shape: f32[9,24,1], index: 2, kind: input, shape index: {}]
  %s3 = inlined_call_operand.vmem [shape: f32[3,24,24], index: 3, kind: input, shape index: {}]
  %s4 = inlined_call_operand.vmem [shape: f32[3,24,1], index: 4, kind: input, shape index: {}]
  %s5 = inlined_call_operand.hbm [shape: f32[3,256], index: 5, kind: output, shape index: {}]
  %s6 = sld [smem:[#allocation0]]
  $region30: #{pinn_forward.1} parent=0
    _
  %s8 = ssub.s32 1, %s6
  %s9 = scalar_select 0, %s8, %s6
  $region1: #{pinn_forward.1} parent=0
    #allocation2 [shape = 'u8[4096]{0}', space=vmem, size = 0x1000, scoped, tag = 'output window, operand 0, single buffered']
    #allocation3 [shape = 's32[1]{0}', space=sflag, size = 0x4, scoped, tag = 'scoped memory for pinn_forward.1']
    %10 = vsyncpa [#allocation3], 0
    // Predicated region
    $region2: #{pinn_forward.1} parent=1 // pred_check
      _
    $region3: #{pinn_forward.1} parent=1 // pred_check_branch
      %12 = sbr.rel (0) target = $region5
    $region4: #{pinn_forward.1} parent=1 // pred_region
      _
    $region5: #{pinn_forward.1} parent=1 // pred_fallthru
      _
    // Predicated region
    $region6: #{pinn_forward.1} parent=1 // pred_check
      _
    $region7: #{pinn_forward.1} parent=1 // pred_check_branch
      %14 = sbr.rel (0) target = $region9
    $region8: #{pinn_forward.1} parent=1 // pred_region
      _
    $region9: #{pinn_forward.1} parent=1 // pred_fallthru
      _
    // Predicated region
    $region10: #{pinn_forward.1} parent=1 // pred_check
      _
    $region11: #{pinn_forward.1} parent=1 // pred_check_branch
      %16 = sbr.rel (0) target = $region13
    $region12: #{pinn_forward.1} parent=1 // pred_region
      _
    $region13: #{pinn_forward.1} parent=1 // pred_fallthru
      _
    // Predicated region
    $region14: #{pinn_forward.1} parent=1 // pred_check
      _
    $region15: #{pinn_forward.1} parent=1 // pred_check_branch
      %18 = sbr.rel (0) target = $region17
    $region16: #{pinn_forward.1} parent=1 // pred_region
      _
    $region17: #{pinn_forward.1} parent=1 // pred_fallthru
      _
    // Predicated region
    $region18: #{pinn_forward.1} parent=1 // pred_check
      _
    $region19: #{pinn_forward.1} parent=1 // pred_check_branch
      %20 = sbr.rel (0) target = $region21
    $region20: #{pinn_forward.1} parent=1 // pred_region
      _
    $region21: #{pinn_forward.1} parent=1 // pred_fallthru
      _
    %v21 = vld [vmem:[%s0] ss:$2 sm:$0x3]
    %s22 = scalar_lea.vmem %s0, 1
    %v23 = vld [vmem:[%s22] ss:$2 sm:$0x3]
    %v24 = vld [vmem:[%s1] sm:$0xff]
    %v25 = vld [vmem:[%s1 + $0x8] sm:$0xff]
    %v26 = vld [vmem:[%s1 + $0x10] sm:$0xff]
    %28 = vset.pattern.permute.xlu0 0
    %29 = vperm.xlu0 %28, %v24
    %v30 = vpop.permute.xlu0 %29
    %33 = vset.pattern.permute.xlu0 0
    %34 = vperm.xlu0 %33, %v25
    %v35 = vpop.permute.xlu0 %34
    %38 = vset.pattern.permute.xlu0 0
    %39 = vperm.xlu0 %38, %v26
    %v40 = vpop.permute.xlu0 %39
    %v43 = vlaneseq
    %v44 = vshrl.u32 %v43, 7
    %v45 = vsub.s32 0, %v44
    %v46 = vrot.slane %v21, %v45
    %v47 = vlaneseq
    %v48 = vshrl.u32 %v47, 7
    %v49 = vsub.s32 1, %v48
    %v50 = vrot.slane %v21, %v49
    %v53 = vmul.f32 %v30, %v46
    %v54 = vmul.f32 %v30, %v50
    %v55 = vmul.f32 %v35, %v46
    %v56 = vmul.f32 %v35, %v50
    %v57 = vmul.f32 %v40, %v46
    %v58 = vmul.f32 %v40, %v50
    %59 = vset.pattern.permute.xlu0 1
    %60 = vperm.xlu0 %59, %v24
    %v61 = vpop.permute.xlu0 %60
    %63 = vset.pattern.permute.xlu0 1
    %64 = vperm.xlu0 %63, %v25
    %v65 = vpop.permute.xlu0 %64
    %67 = vset.pattern.permute.xlu0 1
    %68 = vperm.xlu0 %67, %v26
    %v69 = vpop.permute.xlu0 %68
    %v72 = vlaneseq
    %v73 = vshrl.u32 %v72, 7
    %v74 = vsub.s32 0, %v73
    %v75 = vrot.slane %v23, %v74
    %v76 = vlaneseq
    %v77 = vshrl.u32 %v76, 7
    %v78 = vsub.s32 1, %v77
    %v79 = vrot.slane %v23, %v78
    %v82 = vmul.f32 %v61, %v75
    %v83 = vmul.f32 %v61, %v79
    %v84 = vmul.f32 %v65, %v75
    %v85 = vmul.f32 %v65, %v79
    %v86 = vmul.f32 %v69, %v75
    %v87 = vmul.f32 %v69, %v79
    %v88 = vadd.f32 %v53, %v82
    %v89 = vadd.f32 %v54, %v83
    %v90 = vadd.f32 %v55, %v84
    %v91 = vadd.f32 %v56, %v85
    %v92 = vadd.f32 %v57, %v86
    %v93 = vadd.f32 %v58, %v87
    %v94 = vld [vmem:[%s2] sm:$0xff]
    %v95 = vld [vmem:[%s2 + $0x8] sm:$0xff]
    %v96 = vld [vmem:[%s2 + $0x10] sm:$0xff]
    %98 = vset.pattern.permute.xlu0 0
    %99 = vperm.xlu0 %98, %v94
    %v100 = vpop.permute.xlu0 %99
    %103 = vset.pattern.permute.xlu0 0
    %104 = vperm.xlu0 %103, %v95
    %v105 = vpop.permute.xlu0 %104
    %108 = vset.pattern.permute.xlu0 0
    %109 = vperm.xlu0 %108, %v96
    %v110 = vpop.permute.xlu0 %109
    %v112 = vadd.f32 %v88, %v100
    %v113 = vadd.f32 %v89, %v100
    %v114 = vadd.f32 %v90, %v105
    %v115 = vadd.f32 %v91, %v105
    %v116 = vadd.f32 %v92, %v110
    %v117 = vadd.f32 %v93, %v110
    %v118 = vtanh.pop %v112
    %v119 = vtanh.pop %v113
    %v120 = vtanh.pop %v114
    %v121 = vtanh.pop %v115
    %v122 = vtanh.pop %v116
    %v123 = vtanh.pop %v117
    %s124 = scalar_lea.vmem %s1, 24
    %v125 = vld [vmem:[%s124] sm:$0xff]
    %v126 = vld [vmem:[%s124 + $0x8] sm:$0xff]
    %v127 = vld [vmem:[%s124 + $0x10] sm:$0xff]
    %s128 = scalar_lea.vmem %s2, 24
    %v129 = vld [vmem:[%s128] sm:$0xff]
    %v130 = vld [vmem:[%s128 + $0x8] sm:$0xff]
    %v131 = vld [vmem:[%s128 + $0x10] sm:$0xff]
    %133 = vset.pattern.permute.xlu0 0
    %134 = vperm.xlu0 %133, %v129
    %v135 = vpop.permute.xlu0 %134
    %138 = vset.pattern.permute.xlu0 0
    %139 = vperm.xlu0 %138, %v130
    %v140 = vpop.permute.xlu0 %139
    %143 = vset.pattern.permute.xlu0 0
    %144 = vperm.xlu0 %143, %v131
    %v145 = vpop.permute.xlu0 %144
    %vm147 = vcmask 195584
    %v149 = vsel %vm147, %v125, 0
    %v152 = vsel %vm147, %v126, 0
    %v155 = vsel %vm147, %v127, 0
    %157 = vmatprep.subr.mxu0 %v119
    %158 = vmatpush1.msra.mxu0 %v118
    %159 = vmatprep.subr.mxu0 %v121
    %160 = vmatpush1.msra.mxu0 %v120
    %161 = vmatprep.subr.mxu0 %v123
    %162 = vmatpush1.msra.mxu0 %v122
    %163 = vmatprep.subr.mxu0 0.0
    %164 = vmatpush1.msra.mxu0 0.0
    %165 = vmatprep.subr.mxu0 0.0
    %166 = vmatpush1.msra.mxu0 0.0
    %167 = vmatprep.subr.mxu0 0.0
    %168 = vmatpush1.msra.mxu0 0.0
    %169 = vmatprep.subr.mxu0 0.0
    %170 = vmatpush1.msra.mxu0 0.0
    %171 = vmatprep.subr.mxu0 0.0
    %172 = vmatpush1.msra.mxu0 0.0
    %173 = vmatprep.subr.mxu0 0.0
    %174 = vmatpush1.msra.mxu0 0.0
    %175 = vmatprep.subr.mxu0 0.0
    %176 = vmatpush1.msra.mxu0 0.0
    %177 = vmatprep.subr.mxu0 0.0
    %178 = vmatpush1.msra.mxu0 0.0
    %179 = vmatprep.subr.mxu0 0.0
    %180 = vmatpush1.msra.mxu0 0.0
    %181 = vmatprep.subr.mxu0 0.0
    %182 = vmatpush1.msra.mxu0 0.0
    %183 = vmatprep.subr.mxu0 0.0
    %184 = vmatpush1.msra.mxu0 0.0
    %185 = vmatprep.subr.mxu0 0.0
    %186 = vmatpush1.msra.mxu0 0.0
    %187 = vmatprep.subr.mxu0 0.0
    %188 = vmatpush1.msra.mxu0 0.0
    %189 = vmatprep.subr.mxu0 0.0
    %190 = vmatpush1.msra.mxu0 0.0
    %191 = vmatprep.subr.mxu0 0.0
    %192 = vmatpush1.msra.mxu0 0.0
    %193 = vmatprep.subr.mxu0 0.0
    %194 = vmatpush1.msra.mxu0 0.0
    %195 = vmatprep.subr.mxu0 0.0
    %196 = vmatpush1.msra.mxu0 0.0
    %197 = vmatprep.subr.mxu0 0.0
    %198 = vmatpush1.msra.mxu0 0.0
    %199 = vmatprep.subr.mxu0 0.0
    %200 = vmatpush1.msra.mxu0 0.0
    %201 = vmatprep.subr.mxu0 0.0
    %202 = vmatpush1.msra.mxu0 0.0
    %203 = vmatprep.subr.mxu0 0.0
    %204 = vmatpush1.msra.mxu0 0.0
    %205 = vmatprep.subr.mxu0 0.0
    %206 = vmatpush1.msra.mxu0 0.0
    %207 = vmatprep.subr.mxu0 0.0
    %208 = vmatpush1.msra.mxu0 0.0
    %209 = vmatprep.subr.mxu0 0.0
    %210 = vmatpush1.msra.mxu0 0.0
    %211 = vmatprep.subr.mxu0 0.0
    %212 = vmatpush1.msra.mxu0 0.0
    %213 = vmatprep.subr.mxu0 0.0
    %214 = vmatpush1.msra.mxu0 0.0
    %215 = vmatprep.subr.mxu0 0.0
    %216 = vmatpush1.msra.mxu0 0.0
    %217 = vmatprep.subr.mxu0 0.0
    %218 = vmatpush1.msra.mxu0 0.0
    %219 = vmatprep.subr.mxu0 0.0
    %220 = vmatpush1.msra.mxu0 0.0
    %221 = vmatprep.mubr.f32.mxu0 0.0
    %222 = vmatmul.mubr.f32.gmra.mrb[0].mxu0 %v149
    %v223 = vpop.f32.mrb[0].mxu0
    %v224 = vadd.f32 %v135, %v223
    %v225 = vpop.f32.mrb[0].mxu0
    %v226 = vadd.f32 %v135, %v225
    %227 = vmatprep.mubr.f32.mxu0 0.0
    %228 = vmatmul.mubr.f32.gmra.mrb[0].mxu0 %v152
    %v229 = vpop.f32.mrb[0].mxu0
    %v230 = vadd.f32 %v140, %v229
    %v231 = vpop.f32.mrb[0].mxu0
    %v232 = vadd.f32 %v140, %v231
    %233 = vmatprep.mubr.f32.mxu0 0.0
    %234 = vmatmul.mubr.f32.gmra.mrb[0].mxu0 %v155
    %v235 = vpop.f32.mrb[0].mxu0
    %v236 = vadd.f32 %v145, %v235
    %v237 = vpop.f32.mrb[0].mxu0
    %v238 = vadd.f32 %v145, %v237
    %239 = vdwg.mxu0
    %v240 = vtanh.pop %v224
    %v241 = vtanh.pop %v226
    %v242 = vtanh.pop %v230
    %v243 = vtanh.pop %v232
    %v244 = vtanh.pop %v236
    %v245 = vtanh.pop %v238
    %s246 = scalar_lea.vmem %s1, 48
    %v247 = vld [vmem:[%s246] sm:$0xff]
    %v248 = vld [vmem:[%s246 + $0x8] sm:$0xff]
    %v249 = vld [vmem:[%s246 + $0x10] sm:$0xff]
    %s250 = scalar_lea.vmem %s2, 48
    %v251 = vld [vmem:[%s250] sm:$0xff]
    %v252 = vld [vmem:[%s250 + $0x8] sm:$0xff]
    %v253 = vld [vmem:[%s250 + $0x10] sm:$0xff]
    %255 = vset.pattern.permute.xlu0 0
    %256 = vperm.xlu0 %255, %v251
    %v257 = vpop.permute.xlu0 %256
    %260 = vset.pattern.permute.xlu0 0
    %261 = vperm.xlu0 %260, %v252
    %v262 = vpop.permute.xlu0 %261
    %265 = vset.pattern.permute.xlu0 0
    %266 = vperm.xlu0 %265, %v253
    %v267 = vpop.permute.xlu0 %266
    %v270 = vsel %vm147, %v247, 0
    %v273 = vsel %vm147, %v248, 0
    %v276 = vsel %vm147, %v249, 0
    %278 = vmatprep.subr.mxu0 %v241
    %279 = vmatpush1.msra.mxu0 %v240
    %280 = vmatprep.subr.mxu0 %v243
    %281 = vmatpush1.msra.mxu0 %v242
    %282 = vmatprep.subr.mxu0 %v245
    %283 = vmatpush1.msra.mxu0 %v244
    %284 = vmatprep.subr.mxu0 0.0
    %285 = vmatpush1.msra.mxu0 0.0
    %286 = vmatprep.subr.mxu0 0.0
    %287 = vmatpush1.msra.mxu0 0.0
    %288 = vmatprep.subr.mxu0 0.0
    %289 = vmatpush1.msra.mxu0 0.0
    %290 = vmatprep.subr.mxu0 0.0
    %291 = vmatpush1.msra.mxu0 0.0
    %292 = vmatprep.subr.mxu0 0.0
    %293 = vmatpush1.msra.mxu0 0.0
    %294 = vmatprep.subr.mxu0 0.0
    %295 = vmatpush1.msra.mxu0 0.0
    %296 = vmatprep.subr.mxu0 0.0
    %297 = vmatpush1.msra.mxu0 0.0
    %298 = vmatprep.subr.mxu0 0.0
    %299 = vmatpush1.msra.mxu0 0.0
    %300 = vmatprep.subr.mxu0 0.0
    %301 = vmatpush1.msra.mxu0 0.0
    %302 = vmatprep.subr.mxu0 0.0
    %303 = vmatpush1.msra.mxu0 0.0
    %304 = vmatprep.subr.mxu0 0.0
    %305 = vmatpush1.msra.mxu0 0.0
    %306 = vmatprep.subr.mxu0 0.0
    %307 = vmatpush1.msra.mxu0 0.0
    %308 = vmatprep.subr.mxu0 0.0
    %309 = vmatpush1.msra.mxu0 0.0
    %310 = vmatprep.subr.mxu0 0.0
    %311 = vmatpush1.msra.mxu0 0.0
    %312 = vmatprep.subr.mxu0 0.0
    %313 = vmatpush1.msra.mxu0 0.0
    %314 = vmatprep.subr.mxu0 0.0
    %315 = vmatpush1.msra.mxu0 0.0
    %316 = vmatprep.subr.mxu0 0.0
    %317 = vmatpush1.msra.mxu0 0.0
    %318 = vmatprep.subr.mxu0 0.0
    %319 = vmatpush1.msra.mxu0 0.0
    %320 = vmatprep.subr.mxu0 0.0
    %321 = vmatpush1.msra.mxu0 0.0
    %322 = vmatprep.subr.mxu0 0.0
    %323 = vmatpush1.msra.mxu0 0.0
    %324 = vmatprep.subr.mxu0 0.0
    %325 = vmatpush1.msra.mxu0 0.0
    %326 = vmatprep.subr.mxu0 0.0
    %327 = vmatpush1.msra.mxu0 0.0
    %328 = vmatprep.subr.mxu0 0.0
    %329 = vmatpush1.msra.mxu0 0.0
    %330 = vmatprep.subr.mxu0 0.0
    %331 = vmatpush1.msra.mxu0 0.0
    %332 = vmatprep.subr.mxu0 0.0
    %333 = vmatpush1.msra.mxu0 0.0
    %334 = vmatprep.subr.mxu0 0.0
    %335 = vmatpush1.msra.mxu0 0.0
    %336 = vmatprep.subr.mxu0 0.0
    %337 = vmatpush1.msra.mxu0 0.0
    %338 = vmatprep.subr.mxu0 0.0
    %339 = vmatpush1.msra.mxu0 0.0
    %340 = vmatprep.subr.mxu0 0.0
    %341 = vmatpush1.msra.mxu0 0.0
    %342 = vmatprep.mubr.f32.mxu0 0.0
    %343 = vmatmul.mubr.f32.gmra.mrb[0].mxu0 %v270
    %v344 = vpop.f32.mrb[0].mxu0
    %v345 = vadd.f32 %v257, %v344
    %v346 = vpop.f32.mrb[0].mxu0
    %v347 = vadd.f32 %v257, %v346
    %348 = vmatprep.mubr.f32.mxu0 0.0
    %349 = vmatmul.mubr.f32.gmra.mrb[0].mxu0 %v273
    %v350 = vpop.f32.mrb[0].mxu0
    %v351 = vadd.f32 %v262, %v350
    %v352 = vpop.f32.mrb[0].mxu0
    %v353 = vadd.f32 %v262, %v352
    %354 = vmatprep.mubr.f32.mxu0 0.0
    %355 = vmatmul.mubr.f32.gmra.mrb[0].mxu0 %v276
    %v356 = vpop.f32.mrb[0].mxu0
    %v357 = vadd.f32 %v267, %v356
    %v358 = vpop.f32.mrb[0].mxu0
    %v359 = vadd.f32 %v267, %v358
    %360 = vdwg.mxu0
    %v361 = vtanh.pop %v345
    %v362 = vtanh.pop %v347
    %v363 = vtanh.pop %v351
    %v364 = vtanh.pop %v353
    %v365 = vtanh.pop %v357
    %v366 = vtanh.pop %v359
    %s367 = scalar_lea.vmem %s1, 72
    %v368 = vld [vmem:[%s367] sm:$0xff]
    %v369 = vld [vmem:[%s367 + $0x8] sm:$0xff]
    %v370 = vld [vmem:[%s367 + $0x10] sm:$0xff]
    %s371 = scalar_lea.vmem %s2, 72
    %v372 = vld [vmem:[%s371] sm:$0xff]
    %v373 = vld [vmem:[%s371 + $0x8] sm:$0xff]
    %v374 = vld [vmem:[%s371 + $0x10] sm:$0xff]
    %376 = vset.pattern.permute.xlu0 0
    %377 = vperm.xlu0 %376, %v372
    %v378 = vpop.permute.xlu0 %377
    %381 = vset.pattern.permute.xlu0 0
    %382 = vperm.xlu0 %381, %v373
    %v383 = vpop.permute.xlu0 %382
    %386 = vset.pattern.permute.xlu0 0
    %387 = vperm.xlu0 %386, %v374
    %v388 = vpop.permute.xlu0 %387
    %v391 = vsel %vm147, %v368, 0
    %v394 = vsel %vm147, %v369, 0
    %v397 = vsel %vm147, %v370, 0
    %399 = vmatprep.subr.mxu0 %v362
    %400 = vmatpush1.msra.mxu0 %v361
    %401 = vmatprep.subr.mxu0 %v364
    %402 = vmatpush1.msra.mxu0 %v363
    %403 = vmatprep.subr.mxu0 %v366
    %404 = vmatpush1.msra.mxu0 %v365
    %405 = vmatprep.subr.mxu0 0.0
    %406 = vmatpush1.msra.mxu0 0.0
    %407 = vmatprep.subr.mxu0 0.0
    %408 = vmatpush1.msra.mxu0 0.0
    %409 = vmatprep.subr.mxu0 0.0
    %410 = vmatpush1.msra.mxu0 0.0
    %411 = vmatprep.subr.mxu0 0.0
    %412 = vmatpush1.msra.mxu0 0.0
    %413 = vmatprep.subr.mxu0 0.0
    %414 = vmatpush1.msra.mxu0 0.0
    %415 = vmatprep.subr.mxu0 0.0
    %416 = vmatpush1.msra.mxu0 0.0
    %417 = vmatprep.subr.mxu0 0.0
    %418 = vmatpush1.msra.mxu0 0.0
    %419 = vmatprep.subr.mxu0 0.0
    %420 = vmatpush1.msra.mxu0 0.0
    %421 = vmatprep.subr.mxu0 0.0
    %422 = vmatpush1.msra.mxu0 0.0
    %423 = vmatprep.subr.mxu0 0.0
    %424 = vmatpush1.msra.mxu0 0.0
    %425 = vmatprep.subr.mxu0 0.0
    %426 = vmatpush1.msra.mxu0 0.0
    %427 = vmatprep.subr.mxu0 0.0
    %428 = vmatpush1.msra.mxu0 0.0
    %429 = vmatprep.subr.mxu0 0.0
    %430 = vmatpush1.msra.mxu0 0.0
    %431 = vmatprep.subr.mxu0 0.0
    %432 = vmatpush1.msra.mxu0 0.0
    %433 = vmatprep.subr.mxu0 0.0
    %434 = vmatpush1.msra.mxu0 0.0
    %435 = vmatprep.subr.mxu0 0.0
    %436 = vmatpush1.msra.mxu0 0.0
    %437 = vmatprep.subr.mxu0 0.0
    %438 = vmatpush1.msra.mxu0 0.0
    %439 = vmatprep.subr.mxu0 0.0
    %440 = vmatpush1.msra.mxu0 0.0
    %441 = vmatprep.subr.mxu0 0.0
    %442 = vmatpush1.msra.mxu0 0.0
    %443 = vmatprep.subr.mxu0 0.0
    %444 = vmatpush1.msra.mxu0 0.0
    %445 = vmatprep.subr.mxu0 0.0
    %446 = vmatpush1.msra.mxu0 0.0
    %447 = vmatprep.subr.mxu0 0.0
    %448 = vmatpush1.msra.mxu0 0.0
    %449 = vmatprep.subr.mxu0 0.0
    %450 = vmatpush1.msra.mxu0 0.0
    %451 = vmatprep.subr.mxu0 0.0
    %452 = vmatpush1.msra.mxu0 0.0
    %453 = vmatprep.subr.mxu0 0.0
    %454 = vmatpush1.msra.mxu0 0.0
    %455 = vmatprep.subr.mxu0 0.0
    %456 = vmatpush1.msra.mxu0 0.0
    %457 = vmatprep.subr.mxu0 0.0
    %458 = vmatpush1.msra.mxu0 0.0
    %459 = vmatprep.subr.mxu0 0.0
    %460 = vmatpush1.msra.mxu0 0.0
    %461 = vmatprep.subr.mxu0 0.0
    %462 = vmatpush1.msra.mxu0 0.0
    %463 = vmatprep.mubr.f32.mxu0 0.0
    %464 = vmatmul.mubr.f32.gmra.mrb[0].mxu0 %v391
    %v465 = vpop.f32.mrb[0].mxu0
    %v466 = vadd.f32 %v378, %v465
    %v467 = vpop.f32.mrb[0].mxu0
    %v468 = vadd.f32 %v378, %v467
    %469 = vmatprep.mubr.f32.mxu0 0.0
    %470 = vmatmul.mubr.f32.gmra.mrb[0].mxu0 %v394
    %v471 = vpop.f32.mrb[0].mxu0
    %v472 = vadd.f32 %v383, %v471
    %v473 = vpop.f32.mrb[0].mxu0
    %v474 = vadd.f32 %v383, %v473
    %475 = vmatprep.mubr.f32.mxu0 0.0
    %476 = vmatmul.mubr.f32.gmra.mrb[0].mxu0 %v397
    %v477 = vpop.f32.mrb[0].mxu0
    %v478 = vadd.f32 %v388, %v477
    %v479 = vpop.f32.mrb[0].mxu0
    %v480 = vadd.f32 %v388, %v479
    %481 = vdwg.mxu0
    %v482 = vtanh.pop %v466
    %v483 = vtanh.pop %v468
    %v484 = vtanh.pop %v472
    %v485 = vtanh.pop %v474
    %v486 = vtanh.pop %v478
    %v487 = vtanh.pop %v480
    %s488 = scalar_lea.vmem %s1, 96
    %v489 = vld [vmem:[%s488] sm:$0xff]
    %v490 = vld [vmem:[%s488 + $0x8] sm:$0xff]
    %v491 = vld [vmem:[%s488 + $0x10] sm:$0xff]
    %s492 = scalar_lea.vmem %s2, 96
    %v493 = vld [vmem:[%s492] sm:$0xff]
    %v494 = vld [vmem:[%s492 + $0x8] sm:$0xff]
    %v495 = vld [vmem:[%s492 + $0x10] sm:$0xff]
    %497 = vset.pattern.permute.xlu0 0
    %498 = vperm.xlu0 %497, %v493
    %v499 = vpop.permute.xlu0 %498
    %502 = vset.pattern.permute.xlu0 0
    %503 = vperm.xlu0 %502, %v494
    %v504 = vpop.permute.xlu0 %503
    %507 = vset.pattern.permute.xlu0 0
    %508 = vperm.xlu0 %507, %v495
    %v509 = vpop.permute.xlu0 %508
    %v512 = vsel %vm147, %v489, 0
    %v515 = vsel %vm147, %v490, 0
    %v518 = vsel %vm147, %v491, 0
    %520 = vmatprep.subr.mxu0 %v483
    %521 = vmatpush1.msra.mxu0 %v482
    %522 = vmatprep.subr.mxu0 %v485
    %523 = vmatpush1.msra.mxu0 %v484
    %524 = vmatprep.subr.mxu0 %v487
    %525 = vmatpush1.msra.mxu0 %v486
    %526 = vmatprep.subr.mxu0 0.0
    %527 = vmatpush1.msra.mxu0 0.0
    %528 = vmatprep.subr.mxu0 0.0
    %529 = vmatpush1.msra.mxu0 0.0
    %530 = vmatprep.subr.mxu0 0.0
    %531 = vmatpush1.msra.mxu0 0.0
    %532 = vmatprep.subr.mxu0 0.0
    %533 = vmatpush1.msra.mxu0 0.0
    %534 = vmatprep.subr.mxu0 0.0
    %535 = vmatpush1.msra.mxu0 0.0
    %536 = vmatprep.subr.mxu0 0.0
    %537 = vmatpush1.msra.mxu0 0.0
    %538 = vmatprep.subr.mxu0 0.0
    %539 = vmatpush1.msra.mxu0 0.0
    %540 = vmatprep.subr.mxu0 0.0
    %541 = vmatpush1.msra.mxu0 0.0
    %542 = vmatprep.subr.mxu0 0.0
    %543 = vmatpush1.msra.mxu0 0.0
    %544 = vmatprep.subr.mxu0 0.0
    %545 = vmatpush1.msra.mxu0 0.0
    %546 = vmatprep.subr.mxu0 0.0
    %547 = vmatpush1.msra.mxu0 0.0
    %548 = vmatprep.subr.mxu0 0.0
    %549 = vmatpush1.msra.mxu0 0.0
    %550 = vmatprep.subr.mxu0 0.0
    %551 = vmatpush1.msra.mxu0 0.0
    %552 = vmatprep.subr.mxu0 0.0
    %553 = vmatpush1.msra.mxu0 0.0
    %554 = vmatprep.subr.mxu0 0.0
    %555 = vmatpush1.msra.mxu0 0.0
    %556 = vmatprep.subr.mxu0 0.0
    %557 = vmatpush1.msra.mxu0 0.0
    %558 = vmatprep.subr.mxu0 0.0
    %559 = vmatpush1.msra.mxu0 0.0
    %560 = vmatprep.subr.mxu0 0.0
    %561 = vmatpush1.msra.mxu0 0.0
    %562 = vmatprep.subr.mxu0 0.0
    %563 = vmatpush1.msra.mxu0 0.0
    %564 = vmatprep.subr.mxu0 0.0
    %565 = vmatpush1.msra.mxu0 0.0
    %566 = vmatprep.subr.mxu0 0.0
    %567 = vmatpush1.msra.mxu0 0.0
    %568 = vmatprep.subr.mxu0 0.0
    %569 = vmatpush1.msra.mxu0 0.0
    %570 = vmatprep.subr.mxu0 0.0
    %571 = vmatpush1.msra.mxu0 0.0
    %572 = vmatprep.subr.mxu0 0.0
    %573 = vmatpush1.msra.mxu0 0.0
    %574 = vmatprep.subr.mxu0 0.0
    %575 = vmatpush1.msra.mxu0 0.0
    %576 = vmatprep.subr.mxu0 0.0
    %577 = vmatpush1.msra.mxu0 0.0
    %578 = vmatprep.subr.mxu0 0.0
    %579 = vmatpush1.msra.mxu0 0.0
    %580 = vmatprep.subr.mxu0 0.0
    %581 = vmatpush1.msra.mxu0 0.0
    %582 = vmatprep.subr.mxu0 0.0
    %583 = vmatpush1.msra.mxu0 0.0
    %584 = vmatprep.mubr.f32.mxu0 0.0
    %585 = vmatmul.mubr.f32.gmra.mrb[0].mxu0 %v512
    %v586 = vpop.f32.mrb[0].mxu0
    %v587 = vadd.f32 %v499, %v586
    %v588 = vpop.f32.mrb[0].mxu0
    %v589 = vadd.f32 %v499, %v588
    %590 = vmatprep.mubr.f32.mxu0 0.0
    %591 = vmatmul.mubr.f32.gmra.mrb[0].mxu0 %v515
    %v592 = vpop.f32.mrb[0].mxu0
    %v593 = vadd.f32 %v504, %v592
    %v594 = vpop.f32.mrb[0].mxu0
    %v595 = vadd.f32 %v504, %v594
    %596 = vmatprep.mubr.f32.mxu0 0.0
    %597 = vmatmul.mubr.f32.gmra.mrb[0].mxu0 %v518
    %v598 = vpop.f32.mrb[0].mxu0
    %v599 = vadd.f32 %v509, %v598
    %v600 = vpop.f32.mrb[0].mxu0
    %v601 = vadd.f32 %v509, %v600
    %602 = vdwg.mxu0
    %v603 = vtanh.pop %v587
    %v604 = vtanh.pop %v589
    %v605 = vtanh.pop %v593
    %v606 = vtanh.pop %v595
    %v607 = vtanh.pop %v599
    %v608 = vtanh.pop %v601
    %s609 = scalar_lea.vmem %s1, 120
    %v610 = vld [vmem:[%s609] sm:$0xff]
    %v611 = vld [vmem:[%s609 + $0x8] sm:$0xff]
    %v612 = vld [vmem:[%s609 + $0x10] sm:$0xff]
    %s613 = scalar_lea.vmem %s2, 120
    %v614 = vld [vmem:[%s613] sm:$0xff]
    %v615 = vld [vmem:[%s613 + $0x8] sm:$0xff]
    %v616 = vld [vmem:[%s613 + $0x10] sm:$0xff]
    %618 = vset.pattern.permute.xlu0 0
    %619 = vperm.xlu0 %618, %v614
    %v620 = vpop.permute.xlu0 %619
    %623 = vset.pattern.permute.xlu0 0
    %624 = vperm.xlu0 %623, %v615
    %v625 = vpop.permute.xlu0 %624
    %628 = vset.pattern.permute.xlu0 0
    %629 = vperm.xlu0 %628, %v616
    %v630 = vpop.permute.xlu0 %629
    %v633 = vsel %vm147, %v610, 0
    %v636 = vsel %vm147, %v611, 0
    %v639 = vsel %vm147, %v612, 0
    %641 = vmatprep.subr.mxu0 %v604
    %642 = vmatpush1.msra.mxu0 %v603
    %643 = vmatprep.subr.mxu0 %v606
    %644 = vmatpush1.msra.mxu0 %v605
    %645 = vmatprep.subr.mxu0 %v608
    %646 = vmatpush1.msra.mxu0 %v607
    %647 = vmatprep.subr.mxu0 0.0
    %648 = vmatpush1.msra.mxu0 0.0
    %649 = vmatprep.subr.mxu0 0.0
    %650 = vmatpush1.msra.mxu0 0.0
    %651 = vmatprep.subr.mxu0 0.0
    %652 = vmatpush1.msra.mxu0 0.0
    %653 = vmatprep.subr.mxu0 0.0
    %654 = vmatpush1.msra.mxu0 0.0
    %655 = vmatprep.subr.mxu0 0.0
    %656 = vmatpush1.msra.mxu0 0.0
    %657 = vmatprep.subr.mxu0 0.0
    %658 = vmatpush1.msra.mxu0 0.0
    %659 = vmatprep.subr.mxu0 0.0
    %660 = vmatpush1.msra.mxu0 0.0
    %661 = vmatprep.subr.mxu0 0.0
    %662 = vmatpush1.msra.mxu0 0.0
    %663 = vmatprep.subr.mxu0 0.0
    %664 = vmatpush1.msra.mxu0 0.0
    %665 = vmatprep.subr.mxu0 0.0
    %666 = vmatpush1.msra.mxu0 0.0
    %667 = vmatprep.subr.mxu0 0.0
    %668 = vmatpush1.msra.mxu0 0.0
    %669 = vmatprep.subr.mxu0 0.0
    %670 = vmatpush1.msra.mxu0 0.0
    %671 = vmatprep.subr.mxu0 0.0
    %672 = vmatpush1.msra.mxu0 0.0
    %673 = vmatprep.subr.mxu0 0.0
    %674 = vmatpush1.msra.mxu0 0.0
    %675 = vmatprep.subr.mxu0 0.0
    %676 = vmatpush1.msra.mxu0 0.0
    %677 = vmatprep.subr.mxu0 0.0
    %678 = vmatpush1.msra.mxu0 0.0
    %679 = vmatprep.subr.mxu0 0.0
    %680 = vmatpush1.msra.mxu0 0.0
    %681 = vmatprep.subr.mxu0 0.0
    %682 = vmatpush1.msra.mxu0 0.0
    %683 = vmatprep.subr.mxu0 0.0
    %684 = vmatpush1.msra.mxu0 0.0
    %685 = vmatprep.subr.mxu0 0.0
    %686 = vmatpush1.msra.mxu0 0.0
    %687 = vmatprep.subr.mxu0 0.0
    %688 = vmatpush1.msra.mxu0 0.0
    %689 = vmatprep.subr.mxu0 0.0
    %690 = vmatpush1.msra.mxu0 0.0
    %691 = vmatprep.subr.mxu0 0.0
    %692 = vmatpush1.msra.mxu0 0.0
    %693 = vmatprep.subr.mxu0 0.0
    %694 = vmatpush1.msra.mxu0 0.0
    %695 = vmatprep.subr.mxu0 0.0
    %696 = vmatpush1.msra.mxu0 0.0
    %697 = vmatprep.subr.mxu0 0.0
    %698 = vmatpush1.msra.mxu0 0.0
    %699 = vmatprep.subr.mxu0 0.0
    %700 = vmatpush1.msra.mxu0 0.0
    %701 = vmatprep.subr.mxu0 0.0
    %702 = vmatpush1.msra.mxu0 0.0
    %703 = vmatprep.subr.mxu0 0.0
    %704 = vmatpush1.msra.mxu0 0.0
    %705 = vmatprep.mubr.f32.mxu0 0.0
    %706 = vmatmul.mubr.f32.gmra.mrb[0].mxu0 %v633
    %v707 = vpop.f32.mrb[0].mxu0
    %v708 = vadd.f32 %v620, %v707
    %v709 = vpop.f32.mrb[0].mxu0
    %v710 = vadd.f32 %v620, %v709
    %711 = vmatprep.mubr.f32.mxu0 0.0
    %712 = vmatmul.mubr.f32.gmra.mrb[0].mxu0 %v636
    %v713 = vpop.f32.mrb[0].mxu0
    %v714 = vadd.f32 %v625, %v713
    %v715 = vpop.f32.mrb[0].mxu0
    %v716 = vadd.f32 %v625, %v715
    %717 = vmatprep.mubr.f32.mxu0 0.0
    %718 = vmatmul.mubr.f32.gmra.mrb[0].mxu0 %v639
    %v719 = vpop.f32.mrb[0].mxu0
    %v720 = vadd.f32 %v630, %v719
    %v721 = vpop.f32.mrb[0].mxu0
    %v722 = vadd.f32 %v630, %v721
    %723 = vdwg.mxu0
    %v724 = vtanh.pop %v708
    %v725 = vtanh.pop %v710
    %v726 = vtanh.pop %v714
    %v727 = vtanh.pop %v716
    %v728 = vtanh.pop %v720
    %v729 = vtanh.pop %v722
    %s730 = scalar_lea.vmem %s1, 144
    %v731 = vld [vmem:[%s730] sm:$0xff]
    %v732 = vld [vmem:[%s730 + $0x8] sm:$0xff]
    %v733 = vld [vmem:[%s730 + $0x10] sm:$0xff]
    %s734 = scalar_lea.vmem %s2, 144
    %v735 = vld [vmem:[%s734] sm:$0xff]
    %v736 = vld [vmem:[%s734 + $0x8] sm:$0xff]
    %v737 = vld [vmem:[%s734 + $0x10] sm:$0xff]
    %739 = vset.pattern.permute.xlu0 0
    %740 = vperm.xlu0 %739, %v735
    %v741 = vpop.permute.xlu0 %740
    %744 = vset.pattern.permute.xlu0 0
    %745 = vperm.xlu0 %744, %v736
    %v746 = vpop.permute.xlu0 %745
    %749 = vset.pattern.permute.xlu0 0
    %750 = vperm.xlu0 %749, %v737
    %v751 = vpop.permute.xlu0 %750
    %v754 = vsel %vm147, %v731, 0
    %v757 = vsel %vm147, %v732, 0
    %v760 = vsel %vm147, %v733, 0
    %762 = vmatprep.subr.mxu0 %v725
    %763 = vmatpush1.msra.mxu0 %v724
    %764 = vmatprep.subr.mxu0 %v727
    %765 = vmatpush1.msra.mxu0 %v726
    %766 = vmatprep.subr.mxu0 %v729
    %767 = vmatpush1.msra.mxu0 %v728
    %768 = vmatprep.subr.mxu0 0.0
    %769 = vmatpush1.msra.mxu0 0.0
    %770 = vmatprep.subr.mxu0 0.0
    %771 = vmatpush1.msra.mxu0 0.0
    %772 = vmatprep.subr.mxu0 0.0
    %773 = vmatpush1.msra.mxu0 0.0
    %774 = vmatprep.subr.mxu0 0.0
    %775 = vmatpush1.msra.mxu0 0.0
    %776 = vmatprep.subr.mxu0 0.0
    %777 = vmatpush1.msra.mxu0 0.0
    %778 = vmatprep.subr.mxu0 0.0
    %779 = vmatpush1.msra.mxu0 0.0
    %780 = vmatprep.subr.mxu0 0.0
    %781 = vmatpush1.msra.mxu0 0.0
    %782 = vmatprep.subr.mxu0 0.0
    %783 = vmatpush1.msra.mxu0 0.0
    %784 = vmatprep.subr.mxu0 0.0
    %785 = vmatpush1.msra.mxu0 0.0
    %786 = vmatprep.subr.mxu0 0.0
    %787 = vmatpush1.msra.mxu0 0.0
    %788 = vmatprep.subr.mxu0 0.0
    %789 = vmatpush1.msra.mxu0 0.0
    %790 = vmatprep.subr.mxu0 0.0
    %791 = vmatpush1.msra.mxu0 0.0
    %792 = vmatprep.subr.mxu0 0.0
    %793 = vmatpush1.msra.mxu0 0.0
    %794 = vmatprep.subr.mxu0 0.0
    %795 = vmatpush1.msra.mxu0 0.0
    %796 = vmatprep.subr.mxu0 0.0
    %797 = vmatpush1.msra.mxu0 0.0
    %798 = vmatprep.subr.mxu0 0.0
    %799 = vmatpush1.msra.mxu0 0.0
    %800 = vmatprep.subr.mxu0 0.0
    %801 = vmatpush1.msra.mxu0 0.0
    %802 = vmatprep.subr.mxu0 0.0
    %803 = vmatpush1.msra.mxu0 0.0
    %804 = vmatprep.subr.mxu0 0.0
    %805 = vmatpush1.msra.mxu0 0.0
    %806 = vmatprep.subr.mxu0 0.0
    %807 = vmatpush1.msra.mxu0 0.0
    %808 = vmatprep.subr.mxu0 0.0
    %809 = vmatpush1.msra.mxu0 0.0
    %810 = vmatprep.subr.mxu0 0.0
    %811 = vmatpush1.msra.mxu0 0.0
    %812 = vmatprep.subr.mxu0 0.0
    %813 = vmatpush1.msra.mxu0 0.0
    %814 = vmatprep.subr.mxu0 0.0
    %815 = vmatpush1.msra.mxu0 0.0
    %816 = vmatprep.subr.mxu0 0.0
    %817 = vmatpush1.msra.mxu0 0.0
    %818 = vmatprep.subr.mxu0 0.0
    %819 = vmatpush1.msra.mxu0 0.0
    %820 = vmatprep.subr.mxu0 0.0
    %821 = vmatpush1.msra.mxu0 0.0
    %822 = vmatprep.subr.mxu0 0.0
    %823 = vmatpush1.msra.mxu0 0.0
    %824 = vmatprep.subr.mxu0 0.0
    %825 = vmatpush1.msra.mxu0 0.0
    %826 = vmatprep.mubr.f32.mxu0 0.0
    %827 = vmatmul.mubr.f32.gmra.mrb[0].mxu0 %v754
    %v828 = vpop.f32.mrb[0].mxu0
    %v829 = vadd.f32 %v741, %v828
    %v830 = vpop.f32.mrb[0].mxu0
    %v831 = vadd.f32 %v741, %v830
    %832 = vmatprep.mubr.f32.mxu0 0.0
    %833 = vmatmul.mubr.f32.gmra.mrb[0].mxu0 %v757
    %v834 = vpop.f32.mrb[0].mxu0
    %v835 = vadd.f32 %v746, %v834
    %v836 = vpop.f32.mrb[0].mxu0
    %v837 = vadd.f32 %v746, %v836
    %838 = vmatprep.mubr.f32.mxu0 0.0
    %839 = vmatmul.mubr.f32.gmra.mrb[0].mxu0 %v760
    %v840 = vpop.f32.mrb[0].mxu0
    %v841 = vadd.f32 %v751, %v840
    %v842 = vpop.f32.mrb[0].mxu0
    %v843 = vadd.f32 %v751, %v842
    %844 = vdwg.mxu0
    %v845 = vtanh.pop %v829
    %v846 = vtanh.pop %v831
    %v847 = vtanh.pop %v835
    %v848 = vtanh.pop %v837
    %v849 = vtanh.pop %v841
    %v850 = vtanh.pop %v843
    %s851 = scalar_lea.vmem %s1, 168
    %v852 = vld [vmem:[%s851] sm:$0xff]
    %v853 = vld [vmem:[%s851 + $0x8] sm:$0xff]
    %v854 = vld [vmem:[%s851 + $0x10] sm:$0xff]
    %s855 = scalar_lea.vmem %s2, 168
    %v856 = vld [vmem:[%s855] sm:$0xff]
    %v857 = vld [vmem:[%s855 + $0x8] sm:$0xff]
    %v858 = vld [vmem:[%s855 + $0x10] sm:$0xff]
    %860 = vset.pattern.permute.xlu0 0
    %861 = vperm.xlu0 %860, %v856
    %v862 = vpop.permute.xlu0 %861
    %865 = vset.pattern.permute.xlu0 0
    %866 = vperm.xlu0 %865, %v857
    %v867 = vpop.permute.xlu0 %866
    %870 = vset.pattern.permute.xlu0 0
    %871 = vperm.xlu0 %870, %v858
    %v872 = vpop.permute.xlu0 %871
    %v875 = vsel %vm147, %v852, 0
    %v878 = vsel %vm147, %v853, 0
    %v881 = vsel %vm147, %v854, 0
    %883 = vmatprep.subr.mxu0 %v846
    %884 = vmatpush1.msra.mxu0 %v845
    %885 = vmatprep.subr.mxu0 %v848
    %886 = vmatpush1.msra.mxu0 %v847
    %887 = vmatprep.subr.mxu0 %v850
    %888 = vmatpush1.msra.mxu0 %v849
    %889 = vmatprep.subr.mxu0 0.0
    %890 = vmatpush1.msra.mxu0 0.0
    %891 = vmatprep.subr.mxu0 0.0
    %892 = vmatpush1.msra.mxu0 0.0
    %893 = vmatprep.subr.mxu0 0.0
    %894 = vmatpush1.msra.mxu0 0.0
    %895 = vmatprep.subr.mxu0 0.0
    %896 = vmatpush1.msra.mxu0 0.0
    %897 = vmatprep.subr.mxu0 0.0
    %898 = vmatpush1.msra.mxu0 0.0
    %899 = vmatprep.subr.mxu0 0.0
    %900 = vmatpush1.msra.mxu0 0.0
    %901 = vmatprep.subr.mxu0 0.0
    %902 = vmatpush1.msra.mxu0 0.0
    %903 = vmatprep.subr.mxu0 0.0
    %904 = vmatpush1.msra.mxu0 0.0
    %905 = vmatprep.subr.mxu0 0.0
    %906 = vmatpush1.msra.mxu0 0.0
    %907 = vmatprep.subr.mxu0 0.0
    %908 = vmatpush1.msra.mxu0 0.0
    %909 = vmatprep.subr.mxu0 0.0
    %910 = vmatpush1.msra.mxu0 0.0
    %911 = vmatprep.subr.mxu0 0.0
    %912 = vmatpush1.msra.mxu0 0.0
    %913 = vmatprep.subr.mxu0 0.0
    %914 = vmatpush1.msra.mxu0 0.0
    %915 = vmatprep.subr.mxu0 0.0
    %916 = vmatpush1.msra.mxu0 0.0
    %917 = vmatprep.subr.mxu0 0.0
    %918 = vmatpush1.msra.mxu0 0.0
    %919 = vmatprep.subr.mxu0 0.0
    %920 = vmatpush1.msra.mxu0 0.0
    %921 = vmatprep.subr.mxu0 0.0
    %922 = vmatpush1.msra.mxu0 0.0
    %923 = vmatprep.subr.mxu0 0.0
    %924 = vmatpush1.msra.mxu0 0.0
    %925 = vmatprep.subr.mxu0 0.0
    %926 = vmatpush1.msra.mxu0 0.0
    %927 = vmatprep.subr.mxu0 0.0
    %928 = vmatpush1.msra.mxu0 0.0
    %929 = vmatprep.subr.mxu0 0.0
    %930 = vmatpush1.msra.mxu0 0.0
    %931 = vmatprep.subr.mxu0 0.0
    %932 = vmatpush1.msra.mxu0 0.0
    %933 = vmatprep.subr.mxu0 0.0
    %934 = vmatpush1.msra.mxu0 0.0
    %935 = vmatprep.subr.mxu0 0.0
    %936 = vmatpush1.msra.mxu0 0.0
    %937 = vmatprep.subr.mxu0 0.0
    %938 = vmatpush1.msra.mxu0 0.0
    %939 = vmatprep.subr.mxu0 0.0
    %940 = vmatpush1.msra.mxu0 0.0
    %941 = vmatprep.subr.mxu0 0.0
    %942 = vmatpush1.msra.mxu0 0.0
    %943 = vmatprep.subr.mxu0 0.0
    %944 = vmatpush1.msra.mxu0 0.0
    %945 = vmatprep.subr.mxu0 0.0
    %946 = vmatpush1.msra.mxu0 0.0
    %947 = vmatprep.mubr.f32.mxu0 0.0
    %948 = vmatmul.mubr.f32.gmra.mrb[0].mxu0 %v875
    %v949 = vpop.f32.mrb[0].mxu0
    %v950 = vadd.f32 %v862, %v949
    %v951 = vpop.f32.mrb[0].mxu0
    %v952 = vadd.f32 %v862, %v951
    %953 = vmatprep.mubr.f32.mxu0 0.0
    %954 = vmatmul.mubr.f32.gmra.mrb[0].mxu0 %v878
    %v955 = vpop.f32.mrb[0].mxu0
    %v956 = vadd.f32 %v867, %v955
    %v957 = vpop.f32.mrb[0].mxu0
    %v958 = vadd.f32 %v867, %v957
    %959 = vmatprep.mubr.f32.mxu0 0.0
    %960 = vmatmul.mubr.f32.gmra.mrb[0].mxu0 %v881
    %v961 = vpop.f32.mrb[0].mxu0
    %v962 = vadd.f32 %v872, %v961
    %v963 = vpop.f32.mrb[0].mxu0
    %v964 = vadd.f32 %v872, %v963
    %965 = vdwg.mxu0
    %v966 = vtanh.pop %v950
    %v967 = vtanh.pop %v952
    %v968 = vtanh.pop %v956
    %v969 = vtanh.pop %v958
    %v970 = vtanh.pop %v962
    %v971 = vtanh.pop %v964
    %s972 = scalar_lea.vmem %s1, 192
    %v973 = vld [vmem:[%s972] sm:$0xff]
    %v974 = vld [vmem:[%s972 + $0x8] sm:$0xff]
    %v975 = vld [vmem:[%s972 + $0x10] sm:$0xff]
    %s976 = scalar_lea.vmem %s2, 192
    %v977 = vld [vmem:[%s976] sm:$0xff]
    %v978 = vld [vmem:[%s976 + $0x8] sm:$0xff]
    %v979 = vld [vmem:[%s976 + $0x10] sm:$0xff]
    %981 = vset.pattern.permute.xlu0 0
    %982 = vperm.xlu0 %981, %v977
    %v983 = vpop.permute.xlu0 %982
    %986 = vset.pattern.permute.xlu0 0
    %987 = vperm.xlu0 %986, %v978
    %v988 = vpop.permute.xlu0 %987
    %990 = vset.pattern.permute.xlu0 0
    %991 = vperm.xlu0 %990, %v979
    %v992 = vpop.permute.xlu0 %991
    %v994 = vsel %vm147, %v973, 0
    %v997 = vsel %vm147, %v974, 0
    %v1000 = vsel %vm147, %v975, 0
    %1002 = vmatprep.subr.mxu0 %v967
    %1003 = vmatpush1.msra.mxu0 %v966
    %1004 = vmatprep.subr.mxu0 %v969
    %1005 = vmatpush1.msra.mxu0 %v968
    %1006 = vmatprep.subr.mxu0 %v971
    %1007 = vmatpush1.msra.mxu0 %v970
    %1008 = vmatprep.subr.mxu0 0.0
    %1009 = vmatpush1.msra.mxu0 0.0
    %1010 = vmatprep.subr.mxu0 0.0
    %1011 = vmatpush1.msra.mxu0 0.0
    %1012 = vmatprep.subr.mxu0 0.0
    %1013 = vmatpush1.msra.mxu0 0.0
    %1014 = vmatprep.subr.mxu0 0.0
    %1015 = vmatpush1.msra.mxu0 0.0
    %1016 = vmatprep.subr.mxu0 0.0
    %1017 = vmatpush1.msra.mxu0 0.0
    %1018 = vmatprep.subr.mxu0 0.0
    %1019 = vmatpush1.msra.mxu0 0.0
    %1020 = vmatprep.subr.mxu0 0.0
    %1021 = vmatpush1.msra.mxu0 0.0
    %1022 = vmatprep.subr.mxu0 0.0
    %1023 = vmatpush1.msra.mxu0 0.0
    %1024 = vmatprep.subr.mxu0 0.0
    %1025 = vmatpush1.msra.mxu0 0.0
    %1026 = vmatprep.subr.mxu0 0.0
    %1027 = vmatpush1.msra.mxu0 0.0
    %1028 = vmatprep.subr.mxu0 0.0
    %1029 = vmatpush1.msra.mxu0 0.0
    %1030 = vmatprep.subr.mxu0 0.0
    %1031 = vmatpush1.msra.mxu0 0.0
    %1032 = vmatprep.subr.mxu0 0.0
    %1033 = vmatpush1.msra.mxu0 0.0
    %1034 = vmatprep.subr.mxu0 0.0
    %1035 = vmatpush1.msra.mxu0 0.0
    %1036 = vmatprep.subr.mxu0 0.0
    %1037 = vmatpush1.msra.mxu0 0.0
    %1038 = vmatprep.subr.mxu0 0.0
    %1039 = vmatpush1.msra.mxu0 0.0
    %1040 = vmatprep.subr.mxu0 0.0
    %1041 = vmatpush1.msra.mxu0 0.0
    %1042 = vmatprep.subr.mxu0 0.0
    %1043 = vmatpush1.msra.mxu0 0.0
    %1044 = vmatprep.subr.mxu0 0.0
    %1045 = vmatpush1.msra.mxu0 0.0
    %1046 = vmatprep.subr.mxu0 0.0
    %1047 = vmatpush1.msra.mxu0 0.0
    %1048 = vmatprep.subr.mxu0 0.0
    %1049 = vmatpush1.msra.mxu0 0.0
    %1050 = vmatprep.subr.mxu0 0.0
    %1051 = vmatpush1.msra.mxu0 0.0
    %1052 = vmatprep.subr.mxu0 0.0
    %1053 = vmatpush1.msra.mxu0 0.0
    %1054 = vmatprep.subr.mxu0 0.0
    %1055 = vmatpush1.msra.mxu0 0.0
    %1056 = vmatprep.subr.mxu0 0.0
    %1057 = vmatpush1.msra.mxu0 0.0
    %1058 = vmatprep.subr.mxu0 0.0
    %1059 = vmatpush1.msra.mxu0 0.0
    %1060 = vmatprep.subr.mxu0 0.0
    %1061 = vmatpush1.msra.mxu0 0.0
    %1062 = vmatprep.subr.mxu0 0.0
    %1063 = vmatpush1.msra.mxu0 0.0
    %1064 = vmatprep.subr.mxu0 0.0
    %1065 = vmatpush1.msra.mxu0 0.0
    %1066 = vmatprep.mubr.f32.mxu0 0.0
    %1067 = vmatmul.mubr.f32.gmra.mrb[0].mxu0 %v994
    %v1068 = vpop.f32.mrb[0].mxu0
    %v1069 = vadd.f32 %v983, %v1068
    %v1070 = vpop.f32.mrb[0].mxu0
    %v1071 = vadd.f32 %v983, %v1070
    %1072 = vmatprep.mubr.f32.mxu0 0.0
    %1073 = vmatmul.mubr.f32.gmra.mrb[0].mxu0 %v997
    %v1074 = vpop.f32.mrb[0].mxu0
    %v1075 = vpop.f32.mrb[0].mxu0
    %1076 = vmatprep.mubr.f32.mxu0 0.0
    %1077 = vmatmul.mubr.f32.gmra.mrb[0].mxu0 %v1000
    %v1078 = vpop.f32.mrb[0].mxu0
    %v1079 = vpop.f32.mrb[0].mxu0
    %1080 = vdwg.mxu0
    %v1081 = vld [vmem:[%s3] sm:$0xff]
    %v1082 = vld [vmem:[%s3 + $0x8] sm:$0xff]
    %v1083 = vld [vmem:[%s3 + $0x10] sm:$0xff]
    %1085 = vset.pattern.permute.xlu0 0
    %1086 = vperm.xlu0 %1085, %v1081
    %v1087 = vpop.permute.xlu0 %1086
    %1090 = vset.pattern.permute.xlu0 0
    %1091 = vperm.xlu0 %1090, %v1082
    %v1092 = vpop.permute.xlu0 %1091
    %1095 = vset.pattern.permute.xlu0 0
    %1096 = vperm.xlu0 %1095, %v1083
    %v1097 = vpop.permute.xlu0 %1096
    %v1099 = vlaneseq
    %v1100 = vshrl.u32 %v1099, 7
    %v1101 = vsub.s32 0, %v1100
    %v1102 = vrot.slane %v1069, %v1101
    %v1103 = vlaneseq
    %v1104 = vshrl.u32 %v1103, 7
    %v1105 = vsub.s32 0, %v1104
    %v1106 = vrot.slane %v1071, %v1105
    %v1107 = vmul.f32 %v1087, %v1102
    %v1108 = vmul.f32 %v1087, %v1106
    %v1109 = vmul.f32 %v1092, %v1102
    %v1110 = vmul.f32 %v1092, %v1106
    %v1111 = vmul.f32 %v1097, %v1102
    %v1112 = vmul.f32 %v1097, %v1106
    %v1113 = vld [vmem:[%s4] sm:$0xff]
    %v1114 = vld [vmem:[%s4 + $0x8] sm:$0xff]
    %v1115 = vld [vmem:[%s4 + $0x10] sm:$0xff]
    %1117 = vset.pattern.permute.xlu0 0
    %1118 = vperm.xlu0 %1117, %v1113
    %v1119 = vpop.permute.xlu0 %1118
    %1122 = vset.pattern.permute.xlu0 0
    %1123 = vperm.xlu0 %1122, %v1114
    %v1124 = vpop.permute.xlu0 %1123
    %1127 = vset.pattern.permute.xlu0 0
    %1128 = vperm.xlu0 %1127, %v1115
    %v1129 = vpop.permute.xlu0 %1128
    %v1131 = vadd.f32 %v1107, %v1119
    %v1132 = vadd.f32 %v1108, %v1119
    %v1133 = vadd.f32 %v1109, %v1124
    %v1134 = vadd.f32 %v1110, %v1124
    %v1135 = vadd.f32 %v1111, %v1129
    %v1136 = vadd.f32 %v1112, %v1129
    %v1137 = vtanh.pop %v1131
    %v1138 = vtanh.pop %v1132
    %v1139 = vtanh.pop %v1133
    %v1140 = vtanh.pop %v1134
    %v1141 = vtanh.pop %v1135
    %v1142 = vtanh.pop %v1136
    %s1143 = scalar_lea.vmem %s3, 24
    %v1144 = vld [vmem:[%s1143] sm:$0xff]
    %v1145 = vld [vmem:[%s1143 + $0x8] sm:$0xff]
    %v1146 = vld [vmem:[%s1143 + $0x10] sm:$0xff]
    %s1147 = scalar_lea.vmem %s4, 24
    %v1148 = vld [vmem:[%s1147] sm:$0xff]
    %v1149 = vld [vmem:[%s1147 + $0x8] sm:$0xff]
    %v1150 = vld [vmem:[%s1147 + $0x10] sm:$0xff]
    %1152 = vset.pattern.permute.xlu0 0
    %1153 = vperm.xlu0 %1152, %v1148
    %v1154 = vpop.permute.xlu0 %1153
    %1157 = vset.pattern.permute.xlu0 0
    %1158 = vperm.xlu0 %1157, %v1149
    %v1159 = vpop.permute.xlu0 %1158
    %1162 = vset.pattern.permute.xlu0 0
    %1163 = vperm.xlu0 %1162, %v1150
    %v1164 = vpop.permute.xlu0 %1163
    %v1167 = vsel %vm147, %v1144, 0
    %v1170 = vsel %vm147, %v1145, 0
    %v1173 = vsel %vm147, %v1146, 0
    %1175 = vmatprep.subr.mxu0 %v1138
    %1176 = vmatpush1.msra.mxu0 %v1137
    %1177 = vmatprep.subr.mxu0 %v1140
    %1178 = vmatpush1.msra.mxu0 %v1139
    %1179 = vmatprep.subr.mxu0 %v1142
    %1180 = vmatpush1.msra.mxu0 %v1141
    %1181 = vmatprep.subr.mxu0 0.0
    %1182 = vmatpush1.msra.mxu0 0.0
    %1183 = vmatprep.subr.mxu0 0.0
    %1184 = vmatpush1.msra.mxu0 0.0
    %1185 = vmatprep.subr.mxu0 0.0
    %1186 = vmatpush1.msra.mxu0 0.0
    %1187 = vmatprep.subr.mxu0 0.0
    %1188 = vmatpush1.msra.mxu0 0.0
    %1189 = vmatprep.subr.mxu0 0.0
    %1190 = vmatpush1.msra.mxu0 0.0
    %1191 = vmatprep.subr.mxu0 0.0
    %1192 = vmatpush1.msra.mxu0 0.0
    %1193 = vmatprep.subr.mxu0 0.0
    %1194 = vmatpush1.msra.mxu0 0.0
    %1195 = vmatprep.subr.mxu0 0.0
    %1196 = vmatpush1.msra.mxu0 0.0
    %1197 = vmatprep.subr.mxu0 0.0
    %1198 = vmatpush1.msra.mxu0 0.0
    %1199 = vmatprep.subr.mxu0 0.0
    %1200 = vmatpush1.msra.mxu0 0.0
    %1201 = vmatprep.subr.mxu0 0.0
    %1202 = vmatpush1.msra.mxu0 0.0
    %1203 = vmatprep.subr.mxu0 0.0
    %1204 = vmatpush1.msra.mxu0 0.0
    %1205 = vmatprep.subr.mxu0 0.0
    %1206 = vmatpush1.msra.mxu0 0.0
    %1207 = vmatprep.subr.mxu0 0.0
    %1208 = vmatpush1.msra.mxu0 0.0
    %1209 = vmatprep.subr.mxu0 0.0
    %1210 = vmatpush1.msra.mxu0 0.0
    %1211 = vmatprep.subr.mxu0 0.0
    %1212 = vmatpush1.msra.mxu0 0.0
    %1213 = vmatprep.subr.mxu0 0.0
    %1214 = vmatpush1.msra.mxu0 0.0
    %1215 = vmatprep.subr.mxu0 0.0
    %1216 = vmatpush1.msra.mxu0 0.0
    %1217 = vmatprep.subr.mxu0 0.0
    %1218 = vmatpush1.msra.mxu0 0.0
    %1219 = vmatprep.subr.mxu0 0.0
    %1220 = vmatpush1.msra.mxu0 0.0
    %1221 = vmatprep.subr.mxu0 0.0
    %1222 = vmatpush1.msra.mxu0 0.0
    %1223 = vmatprep.subr.mxu0 0.0
    %1224 = vmatpush1.msra.mxu0 0.0
    %1225 = vmatprep.subr.mxu0 0.0
    %1226 = vmatpush1.msra.mxu0 0.0
    %1227 = vmatprep.subr.mxu0 0.0
    %1228 = vmatpush1.msra.mxu0 0.0
    %1229 = vmatprep.subr.mxu0 0.0
    %1230 = vmatpush1.msra.mxu0 0.0
    %1231 = vmatprep.subr.mxu0 0.0
    %1232 = vmatpush1.msra.mxu0 0.0
    %1233 = vmatprep.subr.mxu0 0.0
    %1234 = vmatpush1.msra.mxu0 0.0
    %1235 = vmatprep.subr.mxu0 0.0
    %1236 = vmatpush1.msra.mxu0 0.0
    %1237 = vmatprep.subr.mxu0 0.0
    %1238 = vmatpush1.msra.mxu0 0.0
    %1239 = vmatprep.mubr.f32.mxu0 0.0
    %1240 = vmatmul.mubr.f32.gmra.mrb[0].mxu0 %v1167
    %v1241 = vpop.f32.mrb[0].mxu0
    %v1242 = vadd.f32 %v1154, %v1241
    %v1243 = vpop.f32.mrb[0].mxu0
    %v1244 = vadd.f32 %v1154, %v1243
    %1245 = vmatprep.mubr.f32.mxu0 0.0
    %1246 = vmatmul.mubr.f32.gmra.mrb[0].mxu0 %v1170
    %v1247 = vpop.f32.mrb[0].mxu0
    %v1248 = vadd.f32 %v1159, %v1247
    %v1249 = vpop.f32.mrb[0].mxu0
    %v1250 = vadd.f32 %v1159, %v1249
    %1251 = vmatprep.mubr.f32.mxu0 0.0
    %1252 = vmatmul.mubr.f32.gmra.mrb[0].mxu0 %v1173
    %v1253 = vpop.f32.mrb[0].mxu0
    %v1254 = vadd.f32 %v1164, %v1253
    %v1255 = vpop.f32.mrb[0].mxu0
    %v1256 = vadd.f32 %v1164, %v1255
    %1257 = vdwg.mxu0
    %v1258 = vtanh.pop %v1242
    %v1259 = vtanh.pop %v1244
    %v1260 = vtanh.pop %v1248
    %v1261 = vtanh.pop %v1250
    %v1262 = vtanh.pop %v1254
    %v1263 = vtanh.pop %v1256
    %s1264 = scalar_lea.vmem %s3, 48
    %v1265 = vld [vmem:[%s1264] sm:$0xff]
    %v1266 = vld [vmem:[%s1264 + $0x8] sm:$0xff]
    %v1267 = vld [vmem:[%s1264 + $0x10] sm:$0xff]
    %s1268 = scalar_lea.vmem %s4, 48
    %v1269 = vld [vmem:[%s1268] sm:$0xff]
    %v1270 = vld [vmem:[%s1268 + $0x8] sm:$0xff]
    %v1271 = vld [vmem:[%s1268 + $0x10] sm:$0xff]
    %1273 = vset.pattern.permute.xlu0 0
    %1274 = vperm.xlu0 %1273, %v1269
    %v1275 = vpop.permute.xlu0 %1274
    %1278 = vset.pattern.permute.xlu0 0
    %1279 = vperm.xlu0 %1278, %v1270
    %v1280 = vpop.permute.xlu0 %1279
    %1282 = vset.pattern.permute.xlu0 0
    %1283 = vperm.xlu0 %1282, %v1271
    %v1284 = vpop.permute.xlu0 %1283
    %v1286 = vsel %vm147, %v1265, 0
    %v1289 = vsel %vm147, %v1266, 0
    %v1292 = vsel %vm147, %v1267, 0
    %1294 = vmatprep.subr.mxu0 %v1259
    %1295 = vmatpush1.msra.mxu0 %v1258
    %1296 = vmatprep.subr.mxu0 %v1261
    %1297 = vmatpush1.msra.mxu0 %v1260
    %1298 = vmatprep.subr.mxu0 %v1263
    %1299 = vmatpush1.msra.mxu0 %v1262
    %1300 = vmatprep.subr.mxu0 0.0
    %1301 = vmatpush1.msra.mxu0 0.0
    %1302 = vmatprep.subr.mxu0 0.0
    %1303 = vmatpush1.msra.mxu0 0.0
    %1304 = vmatprep.subr.mxu0 0.0
    %1305 = vmatpush1.msra.mxu0 0.0
    %1306 = vmatprep.subr.mxu0 0.0
    %1307 = vmatpush1.msra.mxu0 0.0
    %1308 = vmatprep.subr.mxu0 0.0
    %1309 = vmatpush1.msra.mxu0 0.0
    %1310 = vmatprep.subr.mxu0 0.0
    %1311 = vmatpush1.msra.mxu0 0.0
    %1312 = vmatprep.subr.mxu0 0.0
    %1313 = vmatpush1.msra.mxu0 0.0
    %1314 = vmatprep.subr.mxu0 0.0
    %1315 = vmatpush1.msra.mxu0 0.0
    %1316 = vmatprep.subr.mxu0 0.0
    %1317 = vmatpush1.msra.mxu0 0.0
    %1318 = vmatprep.subr.mxu0 0.0
    %1319 = vmatpush1.msra.mxu0 0.0
    %1320 = vmatprep.subr.mxu0 0.0
    %1321 = vmatpush1.msra.mxu0 0.0
    %1322 = vmatprep.subr.mxu0 0.0
    %1323 = vmatpush1.msra.mxu0 0.0
    %1324 = vmatprep.subr.mxu0 0.0
    %1325 = vmatpush1.msra.mxu0 0.0
    %1326 = vmatprep.subr.mxu0 0.0
    %1327 = vmatpush1.msra.mxu0 0.0
    %1328 = vmatprep.subr.mxu0 0.0
    %1329 = vmatpush1.msra.mxu0 0.0
    %1330 = vmatprep.subr.mxu0 0.0
    %1331 = vmatpush1.msra.mxu0 0.0
    %1332 = vmatprep.subr.mxu0 0.0
    %1333 = vmatpush1.msra.mxu0 0.0
    %1334 = vmatprep.subr.mxu0 0.0
    %1335 = vmatpush1.msra.mxu0 0.0
    %1336 = vmatprep.subr.mxu0 0.0
    %1337 = vmatpush1.msra.mxu0 0.0
    %1338 = vmatprep.subr.mxu0 0.0
    %1339 = vmatpush1.msra.mxu0 0.0
    %1340 = vmatprep.subr.mxu0 0.0
    %1341 = vmatpush1.msra.mxu0 0.0
    %1342 = vmatprep.subr.mxu0 0.0
    %1343 = vmatpush1.msra.mxu0 0.0
    %1344 = vmatprep.subr.mxu0 0.0
    %1345 = vmatpush1.msra.mxu0 0.0
    %1346 = vmatprep.subr.mxu0 0.0
    %1347 = vmatpush1.msra.mxu0 0.0
    %1348 = vmatprep.subr.mxu0 0.0
    %1349 = vmatpush1.msra.mxu0 0.0
    %1350 = vmatprep.subr.mxu0 0.0
    %1351 = vmatpush1.msra.mxu0 0.0
    %1352 = vmatprep.subr.mxu0 0.0
    %1353 = vmatpush1.msra.mxu0 0.0
    %1354 = vmatprep.subr.mxu0 0.0
    %1355 = vmatpush1.msra.mxu0 0.0
    %1356 = vmatprep.subr.mxu0 0.0
    %1357 = vmatpush1.msra.mxu0 0.0
    %1358 = vmatprep.mubr.f32.mxu0 0.0
    %1359 = vmatmul.mubr.f32.gmra.mrb[0].mxu0 %v1286
    %v1360 = vpop.f32.mrb[0].mxu0
    %v1361 = vadd.f32 %v1275, %v1360
    %v1362 = vpop.f32.mrb[0].mxu0
    %v1363 = vadd.f32 %v1275, %v1362
    %1364 = vmatprep.mubr.f32.mxu0 0.0
    %1365 = vmatmul.mubr.f32.gmra.mrb[0].mxu0 %v1289
    %v1366 = vpop.f32.mrb[0].mxu0
    %v1367 = vpop.f32.mrb[0].mxu0
    %1368 = vmatprep.mubr.f32.mxu0 0.0
    %1369 = vmatmul.mubr.f32.gmra.mrb[0].mxu0 %v1292
    %v1370 = vpop.f32.mrb[0].mxu0
    %v1371 = vpop.f32.mrb[0].mxu0
    %1372 = vdwg.mxu0
    %v1373 = vadd.f32 %v1069, 1e-06
    %v1374 = vadd.f32 %v1071, 1e-06
    %v1375 = vrcp.pop %v1373
    %v1376 = vmul.f32 %v1361, %v1375
    %v1377 = vrcp.pop %v1374
    %v1378 = vmul.f32 %v1363, %v1377
    %v1381 = vrot.slane %v1361, 7
    %v1382 = vrot.slane %v1363, 7
    %v1387 = vrot.slane %v1376, 6
    %v1388 = vrot.slane %v1378, 6
    %vm1391 = vcmask 1040384
    %v1392 = vsel %vm1391, %v1069, %v1381
    %v1393 = vsel %vm1391, %v1071, %v1382
    %vm1394 = vcmask 1041408
    %v1395 = vsel %vm1394, %v1392, %v1387
    %v1396 = vsel %vm1394, %v1393, %v1388
    %v1399 = vcombine.low %v1395, %v1396
    %1401 = vst [vmem:[#allocation2] sm:$0x77] %v1399
    // Predicated region
    $region22: #{pinn_forward.1} parent=1 // pred_check
      _
    $region23: #{pinn_forward.1} parent=1 // pred_check_branch
      %1403 = sbr.rel (0) target = $region25
    $region24: #{pinn_forward.1} parent=1 // pred_region
      %s1405 = ssub.s32 128, 128
      %1406 = vsyncadd [#allocation3], %s1405
      %s1408 = sshll.u32 [#allocation2], 4
      %s1409 = int_to_ptr.vmem [resolvable:$true] %s1408
      %1411 = dma.vmem_to_hbm [thread:$0]  %s1409, 128, %s5, [#allocation3]
    $region25: #{pinn_forward.1} parent=1 // pred_fallthru
      _
    // Predicated region
    $region26: #{pinn_forward.1} parent=1 // pred_check
      _
    $region27: #{pinn_forward.1} parent=1 // pred_check_branch
      %1413 = sbr.rel (0) target = $region29
    $region28: #{pinn_forward.1} parent=1 // pred_region
      %1414 = dma.done [#allocation3], 128
    $region29: #{pinn_forward.1} parent=1 // pred_fallthru
      _
    %1415 = vsyncpa [#allocation3], 1

</llo_original>
